<compile_context>
chip_gen: v6e
topology: v6e:2x2x1
jax: 0.10.0
libtpu: 0.0.40
codegen_flags: <defaults>
</compile_context>

<pallas_src>
import jax
import jax.numpy as jnp
from jax.experimental import pallas as pl
from jax.experimental.pallas import tpu as pltpu


def relation_attention_kernel(z_ref, w1_ref, bw_ref, o_ref):
    """One grid step handles TB batch rows.

    z_ref : (TB, M*D)  flattened relation-major views of z (lane-aligned per relation)
    w1_ref: (D, H)     first Linear weight (transposed for x @ W)
    bw_ref: (2, H)     row 0 = first Linear bias, row 1 = second Linear weight (as a row)
    o_ref : (TB, D)    output tile
    """
    D, H = w1_ref.shape
    M = z_ref.shape[1] // D

    w1 = w1_ref[...]                       # (D, H)
    b1 = bw_ref[0:1, :]                    # (1, H)
    w2 = bw_ref[1:2, :]                    # (1, H)

    # 1) Per-relation logits: Linear -> tanh (EUP) -> width-1 projection as a VPU multiply
    #    + lane reduce over H (no wasted N=1 MXU matmul). M is small -> static unroll.
    logits = []
    for m in range(M):
        z_m = z_ref[:, m * D:(m + 1) * D]  # (TB, D) lane-aligned view (D multiple of 128)
        h_m = jnp.tanh(
            jnp.dot(z_m, w1, preferred_element_type=jnp.float32) + b1
        )                                                          # (TB, H)
        logits.append(jnp.sum(h_m * w2, axis=-1, keepdims=True))   # (TB, 1)

    # 2) Softmax over the relation axis, fully unrolled on small (TB, 1) vectors.
    mx = logits[0]
    for m in range(1, M):
        mx = jnp.maximum(mx, logits[m])
    exps = [jnp.exp(l - mx) for l in logits]                       # M x (TB, 1)
    denom = exps[0]
    for m in range(1, M):
        denom = denom + exps[m]
    inv = 1.0 / denom                      # exact divide: denom is only (TB, 1)

    # 3) Weighted sum over relations. Re-read z from the ref here instead of keeping a
    #    large z value live across the whole body (avoids vreg spills at large TB).
    acc = (exps[0] * inv) * z_ref[:, 0:D]
    for m in range(1, M):
        acc = acc + (exps[m] * inv) * z_ref[:, m * D:(m + 1) * D]
    o_ref[...] = acc.astype(o_ref.dtype)                           # (TB, D) dense store


def _pick_tb(B, M, D, dtype_bytes=4, vmem_budget_bytes=8 << 20):
    """Batch tile: aim for a 2-step 'parallel' grid (v7x second TC), capped by VMEM."""
    tb = -(-B // 2)                                   # ceil(B / 2)
    tb = ((tb + 7) // 8) * 8                          # sublane multiple
    cap = (vmem_budget_bytes // (2 * (M * D + D) * dtype_bytes))   # double-buffered tiles
    cap = max(8, (cap // 8) * 8)
    tb = min(tb, cap)
    tb = min(tb, ((B + 7) // 8) * 8)                  # never bigger than padded B
    return max(tb, 8)


def relation_attention(z, w1, b1, w2, *, tb=None):
    """z: (B, M, D) f32; w1: (D, H); b1: (H,); w2: (H, 1) -> (B, D).

    Matches RelationAttention.forward of the PyTorch module.
    """
    B, M, D = z.shape
    H = w1.shape[1]
    if tb is None:
        tb = _pick_tb(B, M, D)

    z2 = z.reshape(B, M * D)                 # contiguous reshape: free, no HBM copy
    bw = jnp.concatenate([b1.reshape(1, H), w2.reshape(1, H)], axis=0)   # (2, H)

    # Partial last block: out-of-range batch rows read garbage (tanh-bounded, no NaN risk
    # for other rows since all reductions are per-row) and their writes are masked off.
    grid = (pl.cdiv(B, tb),)

    return pl.pallas_call(
        relation_attention_kernel,
        out_shape=jax.ShapeDtypeStruct((B, D), z.dtype),
        grid_spec=pltpu.PrefetchScalarGridSpec(
            num_scalar_prefetch=0,
            grid=grid,
            in_specs=[
                pl.BlockSpec((tb, M * D), lambda b: (b, 0)),     # z tile
                pl.BlockSpec((D, H), lambda b: (0, 0)),          # W1 (constant block)
                pl.BlockSpec((2, H), lambda b: (0, 0)),          # [b1; w2 row] (constant)
            ],
            out_specs=pl.BlockSpec((tb, D), lambda b: (b, 0)),   # lane/sublane-dense store
        ),
        compiler_params=pltpu.CompilerParams(
            dimension_semantics=("parallel",),                   # megacore / v7x 2nd TC
        ),
    )(z2, w1, bw)


def relation_attention_ref(z, w1, b1, w2):
    """Pure-JAX reference matching the PyTorch forward exactly."""
    h = jnp.tanh(jnp.einsum("bmd,dh->bmh", z, w1) + b1)     # Linear + Tanh
    w = jnp.einsum("bmh,ho->bmo", h, w2)                    # Linear (no bias), (B, M, 1)
    beta = jax.nn.softmax(w, axis=1)                        # softmax over dim=1
    return jnp.sum(beta * z, axis=1)                        # (B, D)


if __name__ == "__main__":
    key = jax.random.PRNGKey(0)
    # batch (users), num_relations (n_u2e + u2i), embed_dim, attention hidden_size
    B, M, D, H = 200, 4, 128, 32

    k_z, k_w1, k_b1, k_w2 = jax.random.split(key, 4)

    z = jax.random.normal(k_z, (B, M, D), dtype=jnp.float32)

    # Deterministic parameter init (uniform, matching nn.Linear's fan-in bound style).
    bound1 = 1.0 / (D ** 0.5)
    w1 = jax.random.uniform(k_w1, (D, H), minval=-bound1, maxval=bound1, dtype=jnp.float32)
    b1 = jax.random.uniform(k_b1, (H,), minval=-bound1, maxval=bound1, dtype=jnp.float32)
    bound2 = 1.0 / (H ** 0.5)
    w2 = jax.random.uniform(k_w2, (H, 1), minval=-bound2, maxval=bound2, dtype=jnp.float32)

    out = relation_attention(z, w1, b1, w2)
    out = jax.block_until_ready(out)

    ref = relation_attention_ref(z, w1, b1, w2)
    assert out.shape == (B, D), out.shape
    err = jnp.max(jnp.abs(out - ref))
    # Exact softmax divide -> only MXU/transcendental rounding differences remain.
    assert jnp.allclose(out, ref, atol=1e-4, rtol=1e-4), f"max abs err {err}"

    print("KERNEL_OK")
</pallas_src>

<mosaic_0001>
module attributes {stable_mosaic.version = 11 : i64} {
  func.func @relation_attention_kernel(%arg0: i32, %arg1: memref<104x512xf32, #tpu.memory_space<vmem>>, %arg2: memref<128x32xf32, #tpu.memory_space<vmem>>, %arg3: memref<2x32xf32, #tpu.memory_space<vmem>>, %arg4: memref<104x128xf32, #tpu.memory_space<vmem>>) attributes {dimension_semantics = [#tpu.dimension_semantics<parallel>], iteration_bounds = array<i64: 2>, scalar_prefetch = 0 : i64, scratch_operands = 0 : i64, tpu.core_type = #tpu.core_type<tc>, window_params = [{transform_indices = @transform_0, window_bounds = array<i64: 104, 512>}, {pipeline_mode = #tpu.pipeline_mode<synchronous>, transform_indices = @transform_1, window_bounds = array<i64: 128, 32>}, {pipeline_mode = #tpu.pipeline_mode<synchronous>, transform_indices = @transform_2, window_bounds = array<i64: 2, 32>}, {transform_indices = @transform_3, window_bounds = array<i64: 104, 128>}]} {
    %c0 = arith.constant 0 : index
    %c0_0 = arith.constant 0 : index
    %0 = vector.load %arg2[%c0, %c0_0] : memref<128x32xf32, #tpu.memory_space<vmem>>, vector<128x32xf32>
    %c0_1 = arith.constant 0 : index
    %c0_2 = arith.constant 0 : index
    %1 = vector.load %arg3[%c0_1, %c0_2] : memref<2x32xf32, #tpu.memory_space<vmem>>, vector<1x32xf32>
    %c1 = arith.constant 1 : index
    %c0_3 = arith.constant 0 : index
    %2 = vector.load %arg3[%c1, %c0_3] : memref<2x32xf32, #tpu.memory_space<vmem>>, vector<1x32xf32>
    %c0_4 = arith.constant 0 : index
    %c0_5 = arith.constant 0 : index
    %3 = vector.load %arg1[%c0_4, %c0_5] : memref<104x512xf32, #tpu.memory_space<vmem>>, vector<104x128xf32>
    %cst = arith.constant dense<0.000000e+00> : vector<104x32xf32>
    %4 = tpu.matmul %3, %0, %cst {dimension_numbers = #tpu.dot_dimension_numbers<[1], [0], [0], [1], [0, 0, 1, 1], [], []>} : vector<104x128xf32>, vector<128x32xf32>, vector<104x32xf32> -> vector<104x32xf32>
    %5 = vector.broadcast %1 : vector<1x32xf32> to vector<104x32xf32>
    %6 = arith.addf %4, %5 : vector<104x32xf32>
    %7 = math.tanh %6 : vector<104x32xf32>
    %8 = vector.broadcast %2 : vector<1x32xf32> to vector<104x32xf32>
    %9 = arith.mulf %7, %8 : vector<104x32xf32>
    %cst_6 = arith.constant dense<0.000000e+00> : vector<104xf32>
    %10 = vector.multi_reduction <add>, %9, %cst_6 [1] : vector<104x32xf32> to vector<104xf32>
    %11 = vector.shape_cast %10 : vector<104xf32> to vector<104x1xf32>
    %c0_7 = arith.constant 0 : index
    %c128 = arith.constant 128 : index
    %12 = vector.load %arg1[%c0_7, %c128] : memref<104x512xf32, #tpu.memory_space<vmem>>, vector<104x128xf32>
    %cst_8 = arith.constant dense<0.000000e+00> : vector<104x32xf32>
    %13 = tpu.matmul %12, %0, %cst_8 {dimension_numbers = #tpu.dot_dimension_numbers<[1], [0], [0], [1], [0, 0, 1, 1], [], []>} : vector<104x128xf32>, vector<128x32xf32>, vector<104x32xf32> -> vector<104x32xf32>
    %14 = vector.broadcast %1 : vector<1x32xf32> to vector<104x32xf32>
    %15 = arith.addf %13, %14 : vector<104x32xf32>
    %16 = math.tanh %15 : vector<104x32xf32>
    %17 = vector.broadcast %2 : vector<1x32xf32> to vector<104x32xf32>
    %18 = arith.mulf %16, %17 : vector<104x32xf32>
    %cst_9 = arith.constant dense<0.000000e+00> : vector<104xf32>
    %19 = vector.multi_reduction <add>, %18, %cst_9 [1] : vector<104x32xf32> to vector<104xf32>
    %20 = vector.shape_cast %19 : vector<104xf32> to vector<104x1xf32>
    %c0_10 = arith.constant 0 : index
    %c256 = arith.constant 256 : index
    %21 = vector.load %arg1[%c0_10, %c256] : memref<104x512xf32, #tpu.memory_space<vmem>>, vector<104x128xf32>
    %cst_11 = arith.constant dense<0.000000e+00> : vector<104x32xf32>
    %22 = tpu.matmul %21, %0, %cst_11 {dimension_numbers = #tpu.dot_dimension_numbers<[1], [0], [0], [1], [0, 0, 1, 1], [], []>} : vector<104x128xf32>, vector<128x32xf32>, vector<104x32xf32> -> vector<104x32xf32>
    %23 = vector.broadcast %1 : vector<1x32xf32> to vector<104x32xf32>
    %24 = arith.addf %22, %23 : vector<104x32xf32>
    %25 = math.tanh %24 : vector<104x32xf32>
    %26 = vector.broadcast %2 : vector<1x32xf32> to vector<104x32xf32>
    %27 = arith.mulf %25, %26 : vector<104x32xf32>
    %cst_12 = arith.constant dense<0.000000e+00> : vector<104xf32>
    %28 = vector.multi_reduction <add>, %27, %cst_12 [1] : vector<104x32xf32> to vector<104xf32>
    %29 = vector.shape_cast %28 : vector<104xf32> to vector<104x1xf32>
    %c0_13 = arith.constant 0 : index
    %c384 = arith.constant 384 : index
    %30 = vector.load %arg1[%c0_13, %c384] : memref<104x512xf32, #tpu.memory_space<vmem>>, vector<104x128xf32>
    %cst_14 = arith.constant dense<0.000000e+00> : vector<104x32xf32>
    %31 = tpu.matmul %30, %0, %cst_14 {dimension_numbers = #tpu.dot_dimension_numbers<[1], [0], [0], [1], [0, 0, 1, 1], [], []>} : vector<104x128xf32>, vector<128x32xf32>, vector<104x32xf32> -> vector<104x32xf32>
    %32 = vector.broadcast %1 : vector<1x32xf32> to vector<104x32xf32>
    %33 = arith.addf %31, %32 : vector<104x32xf32>
    %34 = math.tanh %33 : vector<104x32xf32>
    %35 = vector.broadcast %2 : vector<1x32xf32> to vector<104x32xf32>
    %36 = arith.mulf %34, %35 : vector<104x32xf32>
    %cst_15 = arith.constant dense<0.000000e+00> : vector<104xf32>
    %37 = vector.multi_reduction <add>, %36, %cst_15 [1] : vector<104x32xf32> to vector<104xf32>
    %38 = vector.shape_cast %37 : vector<104xf32> to vector<104x1xf32>
    %39 = arith.maximumf %11, %20 : vector<104x1xf32>
    %40 = arith.maximumf %39, %29 : vector<104x1xf32>
    %41 = arith.maximumf %40, %38 : vector<104x1xf32>
    %42 = arith.subf %11, %41 : vector<104x1xf32>
    %43 = math.exp %42 : vector<104x1xf32>
    %44 = arith.subf %20, %41 : vector<104x1xf32>
    %45 = math.exp %44 : vector<104x1xf32>
    %46 = arith.subf %29, %41 : vector<104x1xf32>
    %47 = math.exp %46 : vector<104x1xf32>
    %48 = arith.subf %38, %41 : vector<104x1xf32>
    %49 = math.exp %48 : vector<104x1xf32>
    %50 = arith.addf %43, %45 : vector<104x1xf32>
    %51 = arith.addf %50, %47 : vector<104x1xf32>
    %52 = arith.addf %51, %49 : vector<104x1xf32>
    %cst_16 = arith.constant 1.000000e+00 : f32
    %53 = vector.broadcast %cst_16 : f32 to vector<104x1xf32>
    %54 = arith.divf %53, %52 : vector<104x1xf32>
    %55 = arith.mulf %43, %54 : vector<104x1xf32>
    %c0_17 = arith.constant 0 : index
    %c0_18 = arith.constant 0 : index
    %56 = vector.load %arg1[%c0_17, %c0_18] : memref<104x512xf32, #tpu.memory_space<vmem>>, vector<104x128xf32>
    %57 = vector.broadcast %55 : vector<104x1xf32> to vector<104x128xf32>
    %58 = arith.mulf %57, %56 : vector<104x128xf32>
    %59 = arith.mulf %45, %54 : vector<104x1xf32>
    %c0_19 = arith.constant 0 : index
    %c128_20 = arith.constant 128 : index
    %60 = vector.load %arg1[%c0_19, %c128_20] : memref<104x512xf32, #tpu.memory_space<vmem>>, vector<104x128xf32>
    %61 = vector.broadcast %59 : vector<104x1xf32> to vector<104x128xf32>
    %62 = arith.mulf %61, %60 : vector<104x128xf32>
    %63 = arith.addf %58, %62 : vector<104x128xf32>
    %64 = arith.mulf %47, %54 : vector<104x1xf32>
    %c0_21 = arith.constant 0 : index
    %c256_22 = arith.constant 256 : index
    %65 = vector.load %arg1[%c0_21, %c256_22] : memref<104x512xf32, #tpu.memory_space<vmem>>, vector<104x128xf32>
    %66 = vector.broadcast %64 : vector<104x1xf32> to vector<104x128xf32>
    %67 = arith.mulf %66, %65 : vector<104x128xf32>
    %68 = arith.addf %63, %67 : vector<104x128xf32>
    %69 = arith.mulf %49, %54 : vector<104x1xf32>
    %c0_23 = arith.constant 0 : index
    %c384_24 = arith.constant 384 : index
    %70 = vector.load %arg1[%c0_23, %c384_24] : memref<104x512xf32, #tpu.memory_space<vmem>>, vector<104x128xf32>
    %71 = vector.broadcast %69 : vector<104x1xf32> to vector<104x128xf32>
    %72 = arith.mulf %71, %70 : vector<104x128xf32>
    %73 = arith.addf %68, %72 : vector<104x128xf32>
    %c0_25 = arith.constant 0 : index
    %c0_26 = arith.constant 0 : index
    %74 = vector.load %arg4[%c0_25, %c0_26] : memref<104x128xf32, #tpu.memory_space<vmem>>, vector<104x128xf32>
    tpu.vector_store %arg4[%c0_25, %c0_26], %73 {strides = array<i32>} : memref<104x128xf32, #tpu.memory_space<vmem>>, vector<104x128xf32>,
    return
  }
  func.func @transform_0(%arg0: i32) -> (i32, i32) {
    %c0_i32 = arith.constant 0 : i32
    %c0_i32_0 = arith.constant 0 : i32
    return %arg0, %c0_i32 : i32, i32
  }
  func.func @transform_1(%arg0: i32) -> (i32, i32) {
    %c0_i32 = arith.constant 0 : i32
    %c0_i32_0 = arith.constant 0 : i32
    %c0_i32_1 = arith.constant 0 : i32
    return %c0_i32, %c0_i32_0 : i32, i32
  }
  func.func @transform_2(%arg0: i32) -> (i32, i32) {
    %c0_i32 = arith.constant 0 : i32
    %c0_i32_0 = arith.constant 0 : i32
    %c0_i32_1 = arith.constant 0 : i32
    return %c0_i32, %c0_i32_0 : i32, i32
  }
  func.func @transform_3(%arg0: i32) -> (i32, i32) {
    %c0_i32 = arith.constant 0 : i32
    %c0_i32_0 = arith.constant 0 : i32
    return %arg0, %c0_i32 : i32, i32
  }
}

</mosaic_0001>

<llo_original>
// kernel: tpu_custom_call.1
$region0: #{tpu_custom_call.1}
  #allocation0 [shape = 'u32[]', space=smem, size = 0x4, offset = 0x4, fixed_abs, tag = 'smem constant byte address 0x4 - core index']
  #allocation1 [shape = 'u32[144,128]{1,0:T(1,128)}', space=vmem, size = 0x12000, scoped, tag = 'internal scratch']
  %s0 = inlined_call_operand.hbm [shape: f32[200,512], index: 0, kind: input, shape index: {}]
  %s1 = inlined_call_operand.vmem [shape: f32[128,32], index: 1, kind: input, shape index: {}]
  %s2 = inlined_call_operand.vmem [shape: f32[2,32], index: 2, kind: input, shape index: {}]
  %s3 = inlined_call_operand.hbm [shape: f32[200,128], index: 3, kind: output, shape index: {}]
  %s4 = sld [smem:[#allocation0]]
  $region49: #{tpu_custom_call.1} parent=0
    _
  %s6 = ssub.s32 1, %s4
  %s7 = scalar_select 0, %s6, %s4
  $region1: #{tpu_custom_call.1} parent=0
    #allocation2 [shape = 'u8[425984]{0}', space=vmem, size = 0x68000, scoped, tag = 'input window, operand 0']
    #allocation3 [shape = 's32[2]{0}', space=sflag, size = 0x8, scoped, tag = 'scoped memory for tpu_custom_call.1']
    #allocation4 [shape = 's32[2]{0}', space=sflag, size = 0x8, scoped, tag = 'scoped memory for tpu_custom_call.1']
    #allocation5 [shape = 'u8[106496]{0}', space=vmem, size = 0x1a000, scoped, tag = 'output window, operand 0']
    %8 = vsyncpa [#allocation3], 0
    %s9 = scalar_lea.sflag [#allocation3], 1
    %10 = vsyncpa %s9, 0
    %11 = vsyncpa [#allocation4], 0
    %s12 = scalar_lea.sflag [#allocation4], 1
    %13 = vsyncpa %s12, 0
    loop: start=0, step=1, limit=4
    $region2: #{tpu_custom_call.1} parent=1 // loop_pre_header
      _
    $region3: #{tpu_custom_call.1} parent=1 // loop_header
      %s15 = sphi 0, %s19
      %p16 = scmp.ge.s32.totalorder %s15, 4
      %s25 = sphi 0, %s27
      %s28 = sphi 0, %s25
      %s29 = sphi 0, %s28
      %s45 = sphi 0, %s29
      %s49 = sphi 0, %s49
      %s51 = sphi 0, %s49
      %s52 = sphi 0, %s51
      %s66 = sphi 0, %s52
      %s70 = sphi 0, %s70
      %s72 = sphi 0, %s70
      %s73 = sphi 0, %s72
      %s87 = sphi 0, %s73
      %s93 = sphi 0, %s95
      %s96 = sphi 0, %s93
      %s97 = sphi 0, %s96
      %s113 = sphi 0, %s97
    $region4: #{tpu_custom_call.1} parent=1 // loop_header_branch
      %18 = sbr.rel (%p16) target = $region8
    $region5: #{tpu_custom_call.1} parent=1 // loop_body
      %s20 = ssub.s32 %s15, 1
      %s21 = ssub.s32 %s15, 2
      %s22 = sadd.s32 %s15, 1
      %s23 = ssub.s32 %s15, %s22
      %p24 = scmp.eq.s32.totalorder %s23, 0
      %s26 = sadd.s32 %s25, 1
      %s27 = scalar_select %p24, %s25, %s26
      %p30 = pneg %p24
      %p31 = scmp.eq.s32.totalorder %s15, 1
      %p32 = por %p30, %p31
      %p33 = scmp.ne.s32.totalorder %s25, %s28
      %p34 = scmp.eq.s32.totalorder %s15, 0
      %p35 = por %p33, %p34
      %p36 = scmp.ne.s32.totalorder %s25, %s28
      %p37 = scmp.eq.s32.totalorder %s20, 1
      %p38 = por %p36, %p37
      %p39 = scmp.ne.s32.totalorder %s28, %s29
      %p40 = scmp.eq.s32.totalorder %s20, 0
      %p41 = por %p39, %p40
      %p42 = scmp.ne.s32.totalorder %s28, %s29
      %p43 = scmp.eq.s32.totalorder %s21, 1
      %p44 = por %p42, %p43
      %p46 = scmp.ne.s32.totalorder %s29, %s45
      %p47 = scmp.eq.s32.totalorder %s21, 0
      %p48 = por %p46, %p47
      %s50 = sadd.s32 %s49, 1
      %p53 = scmp.eq.s32.totalorder %s15, 1
      %p54 = scmp.ne.s32.totalorder %s49, %s51
      %p55 = scmp.eq.s32.totalorder %s15, 0
      %p56 = por %p54, %p55
      %p57 = scmp.ne.s32.totalorder %s49, %s51
      %p58 = scmp.eq.s32.totalorder %s20, 1
      %p59 = por %p57, %p58
      %p60 = scmp.ne.s32.totalorder %s51, %s52
      %p61 = scmp.eq.s32.totalorder %s20, 0
      %p62 = por %p60, %p61
      %p63 = scmp.ne.s32.totalorder %s51, %s52
      %p64 = scmp.eq.s32.totalorder %s21, 1
      %p65 = por %p63, %p64
      %p67 = scmp.ne.s32.totalorder %s52, %s66
      %p68 = scmp.eq.s32.totalorder %s21, 0
      %p69 = por %p67, %p68
      %s71 = sadd.s32 %s70, 1
      %p74 = scmp.eq.s32.totalorder %s15, 1
      %p75 = scmp.ne.s32.totalorder %s70, %s72
      %p76 = scmp.eq.s32.totalorder %s15, 0
      %p77 = por %p75, %p76
      %p78 = scmp.ne.s32.totalorder %s70, %s72
      %p79 = scmp.eq.s32.totalorder %s20, 1
      %p80 = por %p78, %p79
      %p81 = scmp.ne.s32.totalorder %s72, %s73
      %p82 = scmp.eq.s32.totalorder %s20, 0
      %p83 = por %p81, %p82
      %p84 = scmp.ne.s32.totalorder %s72, %s73
      %p85 = scmp.eq.s32.totalorder %s21, 1
      %p86 = por %p84, %p85
      %p88 = scmp.ne.s32.totalorder %s73, %s87
      %p89 = scmp.eq.s32.totalorder %s21, 0
      %p90 = por %p88, %p89
      %s91 = ssub.s32 %s15, %s22
      %p92 = scmp.eq.s32.totalorder %s91, 0
      %s94 = sadd.s32 %s93, 1
      %s95 = scalar_select %p92, %s93, %s94
      %p98 = pneg %p92
      %p99 = scmp.eq.s32.totalorder %s15, 1
      %p100 = por %p98, %p99
      %p101 = scmp.ne.s32.totalorder %s93, %s96
      %p102 = scmp.eq.s32.totalorder %s15, 0
      %p103 = por %p101, %p102
      %p104 = scmp.ne.s32.totalorder %s93, %s96
      %p105 = scmp.eq.s32.totalorder %s20, 1
      %p106 = por %p104, %p105
      %p107 = scmp.ne.s32.totalorder %s96, %s97
      %p108 = scmp.eq.s32.totalorder %s20, 0
      %p109 = por %p107, %p108
      %p110 = scmp.ne.s32.totalorder %s96, %s97
      %p111 = scmp.eq.s32.totalorder %s21, 1
      %p112 = por %p110, %p111
      %p114 = scmp.ne.s32.totalorder %s97, %s113
      %p115 = scmp.eq.s32.totalorder %s21, 0
      %p116 = por %p114, %p115
      %p117 = scmp.le.s32.totalorder 1, %s15
      %p118 = scmp.lt.s32.totalorder %s15, 3
      %p119 = pnand %p117, %p118
      %p120 = pneg %p119
      // Predicated region
      $region9: #{tpu_custom_call.1} parent=5 // pred_check
        _
      $region10: #{tpu_custom_call.1} parent=5 // pred_check_branch
        %122 = sbr.rel (%p119) target = $region12
      $region11: #{tpu_custom_call.1} parent=5 // pred_region
        %s123 = ssub.s32 %s15, 1
        // Predicated region
        $region13: #{tpu_custom_call.1} parent=11 // pred_check
          %p124 = pneg %p62
        $region14: #{tpu_custom_call.1} parent=11 // pred_check_branch
          %126 = sbr.rel (%p124) target = $region16
        $region15: #{tpu_custom_call.1} parent=11 // pred_region
          _
        $region16: #{tpu_custom_call.1} parent=11 // pred_fallthru
          _
        // Predicated region
        $region17: #{tpu_custom_call.1} parent=11 // pred_check
          %p127 = pneg %p83
        $region18: #{tpu_custom_call.1} parent=11 // pred_check_branch
          %129 = sbr.rel (%p127) target = $region20
        $region19: #{tpu_custom_call.1} parent=11 // pred_region
          _
        $region20: #{tpu_custom_call.1} parent=11 // pred_fallthru
          _
      $region12: #{tpu_custom_call.1} parent=5 // pred_fallthru
        _
      %p130 = scmp.lt.s32.totalorder %s15, 2
      // Predicated region
      $region21: #{tpu_custom_call.1} parent=5 // pred_check
        %p131 = pneg %p130
      $region22: #{tpu_custom_call.1} parent=5 // pred_check_branch
        %133 = sbr.rel (%p131) target = $region24
      $region23: #{tpu_custom_call.1} parent=5 // pred_region
        // Predicated region
        $region25: #{tpu_custom_call.1} parent=23 // pred_check
          %p134 = pneg %p35
        $region26: #{tpu_custom_call.1} parent=23 // pred_check_branch
          %136 = sbr.rel (%p134) target = $region28
        $region27: #{tpu_custom_call.1} parent=23 // pred_region
          %s137 = sand.u32 %s25, 1
          %s138 = scalar_lea.sflag [#allocation3], %s137
          %s139 = sand.u32 %s25, 1
          %s140 = smul.addr %s139, 416
          %s141 = scalar_lea.vmem [#allocation2], %s140
          %s142 = smul.u32 13, %s15
          %s143 = ssub.s32 25, %s142
          %p144 = scmp.lt.s32.totalorder %s143, 13
          %s145 = scalar_select %p144, %s143, 13
          %s146 = smul.u32 128, %s145
          %s147 = smul.u32 %s146, 4
          %s149 = ssub.s32 6656, %s147
          %150 = vsyncadd %s138, %s149
          %p151 = scmp.ne.s32.totalorder 0, %s147
          %s152 = smul.addr %s142, 4
          %s153 = smul.addr %s152, 128
          %s154 = scalar_lea.hbm %s0, %s153
          %s155 = smul.u32 32, %s145
          %s156 = sshll.u32 %s141, 4
          %s157 = int_to_ptr.vmem [resolvable:$true] %s156
          %s158 = sshll.u32 %s155, 4
          %162 = dma.hbm_to_vmem [thread:$0]  (%p151), %s154, %s158, %s157, %s138, 512, 512, 32
        $region28: #{tpu_custom_call.1} parent=23 // pred_fallthru
          _
      $region24: #{tpu_custom_call.1} parent=5 // pred_fallthru
        _
      %p163 = scmp.le.s32.totalorder 1, %s15
      %p164 = scmp.lt.s32.totalorder %s15, 3
      %p165 = pnand %p163, %p164
      %p166 = pneg %p165
      // Predicated region
      $region29: #{tpu_custom_call.1} parent=5 // pred_check
        _
      $region30: #{tpu_custom_call.1} parent=5 // pred_check_branch
        %168 = sbr.rel (%p165) target = $region32
      $region31: #{tpu_custom_call.1} parent=5 // pred_region
        %s169 = ssub.s32 %s15, 1
        %s170 = sand.u32 %s28, 1
        %s171 = scalar_lea.sflag [#allocation3], %s170
        %s172 = sand.u32 %s28, 1
        %s173 = smul.addr %s172, 416
        %s174 = scalar_lea.vmem [#allocation2], %s173
        // Predicated region
        $region33: #{tpu_custom_call.1} parent=31 // pred_check
          %p175 = pneg %p41
        $region34: #{tpu_custom_call.1} parent=31 // pred_check_branch
          %177 = sbr.rel (%p175) target = $region36
        $region35: #{tpu_custom_call.1} parent=31 // pred_region
          %178 = dma.done %s171, 6656
        $region36: #{tpu_custom_call.1} parent=31 // pred_fallthru
          _
        %s179 = sand.u32 %s28, 1
        %s180 = scalar_lea.sflag [#allocation3], %s179
        %s181 = sand.u32 %s28, 1
        %s182 = smul.addr %s181, 416
        %s183 = scalar_lea.vmem [#allocation2], %s182
        %p184 = pneg %p41
        %p185 = pneg %p38
        %p186 = pneg %p62
        %p187 = pneg %p59
        %p188 = pneg %p83
        %p189 = pneg %p80
        %p190 = pneg %p109
        %p191 = pneg %p106
        %s192 = sand.u32 %s96, 1
        %s193 = scalar_lea.sflag [#allocation4], %s192
        %s194 = sand.u32 %s96, 1
        %s195 = smul.addr %s194, 104
        %s196 = scalar_lea.vmem [#allocation5], %s195
        %s197 = smul.u32 13, %s20
        %s198 = ssub.s32 25, %s197
        %p199 = scmp.lt.s32.totalorder %s198, 13
        %s200 = scalar_select %p199, %s198, 13
        %s201 = smul.u32 128, %s200
        %s202 = smul.u32 %s201, 4
        %s203 = smul.u32 13, %s20
        %s204 = ssub.s32 25, %s203
        %p205 = scmp.lt.s32.totalorder %s204, 13
        %s206 = scalar_select %p205, %s204, 13
        %s207 = smul.u32 128, %s206
        %v208 = vld [vmem:[%s1] sm:$0xff]
        %v209 = vld [vmem:[%s1 + $0x8] sm:$0xff]
        %v210 = vld [vmem:[%s1 + $0x10] sm:$0xff]
        %v211 = vld [vmem:[%s1 + $0x18] sm:$0xff]
        %v212 = vld [vmem:[%s1 + $0x20] sm:$0xff]
        %v213 = vld [vmem:[%s1 + $0x28] sm:$0xff]
        %v214 = vld [vmem:[%s1 + $0x30] sm:$0xff]
        %v215 = vld [vmem:[%s1 + $0x38] sm:$0xff]
        %v216 = vld [vmem:[%s1 + $0x40] sm:$0xff]
        %v217 = vld [vmem:[%s1 + $0x48] sm:$0xff]
        %v218 = vld [vmem:[%s1 + $0x50] sm:$0xff]
        %v219 = vld [vmem:[%s1 + $0x58] sm:$0xff]
        %v220 = vld [vmem:[%s1 + $0x60] sm:$0xff]
        %v221 = vld [vmem:[%s1 + $0x68] sm:$0xff]
        %v222 = vld [vmem:[%s1 + $0x70] sm:$0xff]
        %v223 = vld [vmem:[%s1 + $0x78] sm:$0xff]
        %v224 = vld [vmem:[%s2] sm:$0x1]
        %v225 = vld [vmem:[%s2 + $0x1] sm:$0x1]
        %v226 = vld [vmem:[%s174] sm:$0xff]
        %v227 = vld [vmem:[%s174 + $0x20] sm:$0xff]
        %v228 = vld [vmem:[%s174 + $0x40] sm:$0xff]
        %v229 = vld [vmem:[%s174 + $0x60] sm:$0xff]
        %v230 = vld [vmem:[%s174 + $0x80] sm:$0xff]
        %v231 = vld [vmem:[%s174 + $0xa0] sm:$0xff]
        %v232 = vld [vmem:[%s174 + $0xc0] sm:$0xff]
        %v233 = vld [vmem:[%s174 + $0xe0] sm:$0xff]
        %v234 = vld [vmem:[%s174 + $0x100] sm:$0xff]
        %v235 = vld [vmem:[%s174 + $0x120] sm:$0xff]
        %v236 = vld [vmem:[%s174 + $0x140] sm:$0xff]
        %v237 = vld [vmem:[%s174 + $0x160] sm:$0xff]
        %v238 = vld [vmem:[%s174 + $0x180] sm:$0xff]
        %v239 = vlaneseq
        %v240 = vshrl.u32 %v239, 7
        %v241 = vsub.s32 0, %v240
        %v242 = vrot.slane %v224, %v241
        %243 = vmatprep.subr.mxu0 0.0
        %244 = vmatpush1.msra.mxu0 %v223
        %245 = vmatprep.subr.mxu0 0.0
        %246 = vmatpush1.msra.mxu0 %v222
        %247 = vmatprep.subr.mxu0 0.0
        %248 = vmatpush1.msra.mxu0 %v221
        %249 = vmatprep.subr.mxu0 0.0
        %250 = vmatpush1.msra.mxu0 %v220
        %251 = vmatprep.subr.mxu0 0.0
        %252 = vmatpush1.msra.mxu0 %v219
        %253 = vmatprep.subr.mxu0 0.0
        %254 = vmatpush1.msra.mxu0 %v218
        %255 = vmatprep.subr.mxu0 0.0
        %256 = vmatpush1.msra.mxu0 %v217
        %257 = vmatprep.subr.mxu0 0.0
        %258 = vmatpush1.msra.mxu0 %v216
        %259 = vmatprep.subr.mxu0 0.0
        %260 = vmatpush1.msra.mxu0 %v215
        %261 = vmatprep.subr.mxu0 0.0
        %262 = vmatpush1.msra.mxu0 %v214
        %263 = vmatprep.subr.mxu0 0.0
        %264 = vmatpush1.msra.mxu0 %v213
        %265 = vmatprep.subr.mxu0 0.0
        %266 = vmatpush1.msra.mxu0 %v212
        %267 = vmatprep.subr.mxu0 0.0
        %268 = vmatpush1.msra.mxu0 %v211
        %269 = vmatprep.subr.mxu0 0.0
        %270 = vmatpush1.msra.mxu0 %v210
        %271 = vmatprep.subr.mxu0 0.0
        %272 = vmatpush1.msra.mxu0 %v209
        %273 = vmatprep.subr.mxu0 0.0
        %274 = vmatpush1.msra.mxu0 %v208
        %275 = vmatprep.subr.mxu0 0.0
        %276 = vmatpush2.msra.mxu0 0.0
        %277 = vmatprep.subr.mxu0 0.0
        %278 = vmatpush2.msra.mxu0 0.0
        %279 = vmatprep.subr.mxu0 0.0
        %280 = vmatpush2.msra.mxu0 0.0
        %281 = vmatprep.subr.mxu0 0.0
        %282 = vmatpush2.msra.mxu0 0.0
        %283 = vmatprep.subr.mxu0 0.0
        %284 = vmatpush2.msra.mxu0 0.0
        %285 = vmatprep.subr.mxu0 0.0
        %286 = vmatpush2.msra.mxu0 0.0
        %287 = vmatprep.subr.mxu0 0.0
        %288 = vmatpush2.msra.mxu0 0.0
        %289 = vmatprep.subr.mxu0 0.0
        %290 = vmatpush2.msra.mxu0 0.0
        %291 = vmatprep.subr.mxu0 0.0
        %292 = vmatpush2.msra.mxu0 0.0
        %293 = vmatprep.subr.mxu0 0.0
        %294 = vmatpush2.msra.mxu0 0.0
        %295 = vmatprep.subr.mxu0 0.0
        %296 = vmatpush2.msra.mxu0 0.0
        %297 = vmatprep.subr.mxu0 0.0
        %298 = vmatpush2.msra.mxu0 0.0
        %299 = vmatprep.subr.mxu0 0.0
        %300 = vmatpush2.msra.mxu0 0.0
        %301 = vmatprep.subr.mxu0 0.0
        %302 = vmatpush2.msra.mxu0 0.0
        %303 = vmatprep.subr.mxu0 0.0
        %304 = vmatpush2.msra.mxu0 0.0
        %305 = vmatprep.subr.mxu0 0.0
        %306 = vmatpush2.msra.mxu0 0.0
        %307 = vmatprep.mubr.f32.mxu0 0.0
        %308 = vmatmul.mubr.f32.gmra.mxu0 %v226
        %v309 = vpop.f32.mrf.mxu0
        %v310 = vadd.f32 %v242, %v309
        %v311 = vpop.f32.mrf.mxu0
        %312 = vmatprep.mubr.f32.mxu0 0.0
        %313 = vmatmul.mubr.f32.gmra.mxu0 %v227
        %v314 = vpop.f32.mrf.mxu0
        %v315 = vadd.f32 %v242, %v314
        %v316 = vpop.f32.mrf.mxu0
        %317 = vmatprep.mubr.f32.mxu0 0.0
        %318 = vmatmul.mubr.f32.gmra.mxu0 %v228
        %v319 = vpop.f32.mrf.mxu0
        %v320 = vadd.f32 %v242, %v319
        %v321 = vpop.f32.mrf.mxu0
        %322 = vmatprep.mubr.f32.mxu0 0.0
        %323 = vmatmul.mubr.f32.gmra.mxu0 %v229
        %v324 = vpop.f32.mrf.mxu0
        %v325 = vadd.f32 %v242, %v324
        %v326 = vpop.f32.mrf.mxu0
        %327 = vmatprep.mubr.f32.mxu0 0.0
        %328 = vmatmul.mubr.f32.gmra.mxu0 %v230
        %v329 = vpop.f32.mrf.mxu0
        %v330 = vadd.f32 %v242, %v329
        %v331 = vpop.f32.mrf.mxu0
        %332 = vmatprep.mubr.f32.mxu0 0.0
        %333 = vmatmul.mubr.f32.gmra.mxu0 %v231
        %v334 = vpop.f32.mrf.mxu0
        %v335 = vadd.f32 %v242, %v334
        %v336 = vpop.f32.mrf.mxu0
        %337 = vmatprep.mubr.f32.mxu0 0.0
        %338 = vmatmul.mubr.f32.gmra.mxu0 %v232
        %v339 = vpop.f32.mrf.mxu0
        %v340 = vadd.f32 %v242, %v339
        %v341 = vpop.f32.mrf.mxu0
        %342 = vmatprep.mubr.f32.mxu0 0.0
        %343 = vmatmul.mubr.f32.gmra.mxu0 %v233
        %v344 = vpop.f32.mrf.mxu0
        %v345 = vadd.f32 %v242, %v344
        %v346 = vpop.f32.mrf.mxu0
        %347 = vmatprep.mubr.f32.mxu0 0.0
        %348 = vmatmul.mubr.f32.gmra.mxu0 %v234
        %v349 = vpop.f32.mrf.mxu0
        %v350 = vadd.f32 %v242, %v349
        %v351 = vpop.f32.mrf.mxu0
        %352 = vmatprep.mubr.f32.mxu0 0.0
        %353 = vmatmul.mubr.f32.gmra.mxu0 %v235
        %v354 = vpop.f32.mrf.mxu0
        %v355 = vadd.f32 %v242, %v354
        %v356 = vpop.f32.mrf.mxu0
        %357 = vmatprep.mubr.f32.mxu0 0.0
        %358 = vmatmul.mubr.f32.gmra.mxu0 %v236
        %v359 = vpop.f32.mrf.mxu0
        %v360 = vadd.f32 %v242, %v359
        %v361 = vpop.f32.mrf.mxu0
        %362 = vmatprep.mubr.f32.mxu0 0.0
        %363 = vmatmul.mubr.f32.gmra.mxu0 %v237
        %v364 = vpop.f32.mrf.mxu0
        %v365 = vadd.f32 %v242, %v364
        %v366 = vpop.f32.mrf.mxu0
        %367 = vmatprep.mubr.f32.mxu0 0.0
        %368 = vmatmul.mubr.f32.gmra.mxu0 %v238
        %v369 = vpop.f32.mrf.mxu0
        %v370 = vadd.f32 %v242, %v369
        %v371 = vpop.f32.mrf.mxu0
        %372 = vdwg.mxu0
        %v373 = vtanh.pop %v310
        %v374 = vtanh.pop %v315
        %v375 = vtanh.pop %v320
        %v376 = vtanh.pop %v325
        %v377 = vtanh.pop %v330
        %v378 = vtanh.pop %v335
        %v379 = vtanh.pop %v340
        %v380 = vtanh.pop %v345
        %v381 = vtanh.pop %v350
        %v382 = vtanh.pop %v355
        %v383 = vtanh.pop %v360
        %v384 = vtanh.pop %v365
        %v385 = vtanh.pop %v370
        %v386 = vlaneseq
        %v387 = vshrl.u32 %v386, 7
        %v388 = vsub.s32 0, %v387
        %v389 = vrot.slane %v225, %v388
        %v390 = vmul.f32 %v373, %v389
        %v391 = vmul.f32 %v374, %v389
        %v392 = vmul.f32 %v375, %v389
        %v393 = vmul.f32 %v376, %v389
        %v394 = vmul.f32 %v377, %v389
        %v395 = vmul.f32 %v378, %v389
        %v396 = vmul.f32 %v379, %v389
        %v397 = vmul.f32 %v380, %v389
        %v398 = vmul.f32 %v381, %v389
        %v399 = vmul.f32 %v382, %v389
        %v400 = vmul.f32 %v383, %v389
        %v401 = vmul.f32 %v384, %v389
        %v402 = vmul.f32 %v385, %v389
        %vm403 = vcmask 261120
        %v404 = vsel %vm403, %v390, 0.0
        %405 = vadd.xlane.f32.xlu0 %v404
        %v406 = vpop.xlane.xlu0 %405
        %v407 = vsel %vm403, %v391, 0.0
        %408 = vadd.xlane.f32.xlu0 %v407
        %v409 = vpop.xlane.xlu0 %408
        %v410 = vsel %vm403, %v392, 0.0
        %411 = vadd.xlane.f32.xlu0 %v410
        %v412 = vpop.xlane.xlu0 %411
        %v413 = vsel %vm403, %v393, 0.0
        %414 = vadd.xlane.f32.xlu0 %v413
        %v415 = vpop.xlane.xlu0 %414
        %v416 = vsel %vm403, %v394, 0.0
        %417 = vadd.xlane.f32.xlu0 %v416
        %v418 = vpop.xlane.xlu0 %417
        %v419 = vsel %vm403, %v395, 0.0
        %420 = vadd.xlane.f32.xlu0 %v419
        %v421 = vpop.xlane.xlu0 %420
        %v422 = vsel %vm403, %v396, 0.0
        %423 = vadd.xlane.f32.xlu0 %v422
        %v424 = vpop.xlane.xlu0 %423
        %v425 = vsel %vm403, %v397, 0.0
        %426 = vadd.xlane.f32.xlu0 %v425
        %v427 = vpop.xlane.xlu0 %426
        %v428 = vsel %vm403, %v398, 0.0
        %429 = vadd.xlane.f32.xlu0 %v428
        %v430 = vpop.xlane.xlu0 %429
        %v431 = vsel %vm403, %v399, 0.0
        %432 = vadd.xlane.f32.xlu0 %v431
        %v433 = vpop.xlane.xlu0 %432
        %v434 = vsel %vm403, %v400, 0.0
        %435 = vadd.xlane.f32.xlu0 %v434
        %v436 = vpop.xlane.xlu0 %435
        %v437 = vsel %vm403, %v401, 0.0
        %438 = vadd.xlane.f32.xlu0 %v437
        %v439 = vpop.xlane.xlu0 %438
        %v440 = vsel %vm403, %v402, 0.0
        %441 = vadd.xlane.f32.xlu0 %v440
        %v442 = vpop.xlane.xlu0 %441
        %v443 = vld [vmem:[%s174 + $0x8] sm:$0xff]
        %v444 = vld [vmem:[%s174 + $0x28] sm:$0xff]
        %v445 = vld [vmem:[%s174 + $0x48] sm:$0xff]
        %v446 = vld [vmem:[%s174 + $0x68] sm:$0xff]
        %v447 = vld [vmem:[%s174 + $0x88] sm:$0xff]
        %v448 = vld [vmem:[%s174 + $0xa8] sm:$0xff]
        %v449 = vld [vmem:[%s174 + $0xc8] sm:$0xff]
        %v450 = vld [vmem:[%s174 + $0xe8] sm:$0xff]
        %v451 = vld [vmem:[%s174 + $0x108] sm:$0xff]
        %v452 = vld [vmem:[%s174 + $0x128] sm:$0xff]
        %v453 = vld [vmem:[%s174 + $0x148] sm:$0xff]
        %v454 = vld [vmem:[%s174 + $0x168] sm:$0xff]
        %v455 = vld [vmem:[%s174 + $0x188] sm:$0xff]
        %456 = vmatprep.subr.mxu0 0.0
        %457 = vmatpush1.msra.mxu0 %v223
        %458 = vmatprep.subr.mxu0 0.0
        %459 = vmatpush1.msra.mxu0 %v222
        %460 = vmatprep.subr.mxu0 0.0
        %461 = vmatpush1.msra.mxu0 %v221
        %462 = vmatprep.subr.mxu0 0.0
        %463 = vmatpush1.msra.mxu0 %v220
        %464 = vmatprep.subr.mxu0 0.0
        %465 = vmatpush1.msra.mxu0 %v219
        %466 = vmatprep.subr.mxu0 0.0
        %467 = vmatpush1.msra.mxu0 %v218
        %468 = vmatprep.subr.mxu0 0.0
        %469 = vmatpush1.msra.mxu0 %v217
        %470 = vmatprep.subr.mxu0 0.0
        %471 = vmatpush1.msra.mxu0 %v216
        %472 = vmatprep.subr.mxu0 0.0
        %473 = vmatpush1.msra.mxu0 %v215
        %474 = vmatprep.subr.mxu0 0.0
        %475 = vmatpush1.msra.mxu0 %v214
        %476 = vmatprep.subr.mxu0 0.0
        %477 = vmatpush1.msra.mxu0 %v213
        %478 = vmatprep.subr.mxu0 0.0
        %479 = vmatpush1.msra.mxu0 %v212
        %480 = vmatprep.subr.mxu0 0.0
        %481 = vmatpush1.msra.mxu0 %v211
        %482 = vmatprep.subr.mxu0 0.0
        %483 = vmatpush1.msra.mxu0 %v210
        %484 = vmatprep.subr.mxu0 0.0
        %485 = vmatpush1.msra.mxu0 %v209
        %486 = vmatprep.subr.mxu0 0.0
        %487 = vmatpush1.msra.mxu0 %v208
        %488 = vmatprep.subr.mxu0 0.0
        %489 = vmatpush2.msra.mxu0 0.0
        %490 = vmatprep.subr.mxu0 0.0
        %491 = vmatpush2.msra.mxu0 0.0
        %492 = vmatprep.subr.mxu0 0.0
        %493 = vmatpush2.msra.mxu0 0.0
        %494 = vmatprep.subr.mxu0 0.0
        %495 = vmatpush2.msra.mxu0 0.0
        %496 = vmatprep.subr.mxu0 0.0
        %497 = vmatpush2.msra.mxu0 0.0
        %498 = vmatprep.subr.mxu0 0.0
        %499 = vmatpush2.msra.mxu0 0.0
        %500 = vmatprep.subr.mxu0 0.0
        %501 = vmatpush2.msra.mxu0 0.0
        %502 = vmatprep.subr.mxu0 0.0
        %503 = vmatpush2.msra.mxu0 0.0
        %504 = vmatprep.subr.mxu0 0.0
        %505 = vmatpush2.msra.mxu0 0.0
        %506 = vmatprep.subr.mxu0 0.0
        %507 = vmatpush2.msra.mxu0 0.0
        %508 = vmatprep.subr.mxu0 0.0
        %509 = vmatpush2.msra.mxu0 0.0
        %510 = vmatprep.subr.mxu0 0.0
        %511 = vmatpush2.msra.mxu0 0.0
        %512 = vmatprep.subr.mxu0 0.0
        %513 = vmatpush2.msra.mxu0 0.0
        %514 = vmatprep.subr.mxu0 0.0
        %515 = vmatpush2.msra.mxu0 0.0
        %516 = vmatprep.subr.mxu0 0.0
        %517 = vmatpush2.msra.mxu0 0.0
        %518 = vmatprep.subr.mxu0 0.0
        %519 = vmatpush2.msra.mxu0 0.0
        %520 = vmatprep.mubr.f32.mxu0 0.0
        %521 = vmatmul.mubr.f32.gmra.mxu0 %v443
        %v522 = vpop.f32.mrf.mxu0
        %v523 = vadd.f32 %v242, %v522
        %v524 = vpop.f32.mrf.mxu0
        %525 = vmatprep.mubr.f32.mxu0 0.0
        %526 = vmatmul.mubr.f32.gmra.mxu0 %v444
        %v527 = vpop.f32.mrf.mxu0
        %v528 = vadd.f32 %v242, %v527
        %v529 = vpop.f32.mrf.mxu0
        %530 = vmatprep.mubr.f32.mxu0 0.0
        %531 = vmatmul.mubr.f32.gmra.mxu0 %v445
        %v532 = vpop.f32.mrf.mxu0
        %v533 = vadd.f32 %v242, %v532
        %v534 = vpop.f32.mrf.mxu0
        %535 = vmatprep.mubr.f32.mxu0 0.0
        %536 = vmatmul.mubr.f32.gmra.mxu0 %v446
        %v537 = vpop.f32.mrf.mxu0
        %v538 = vadd.f32 %v242, %v537
        %v539 = vpop.f32.mrf.mxu0
        %540 = vmatprep.mubr.f32.mxu0 0.0
        %541 = vmatmul.mubr.f32.gmra.mxu0 %v447
        %v542 = vpop.f32.mrf.mxu0
        %v543 = vadd.f32 %v242, %v542
        %v544 = vpop.f32.mrf.mxu0
        %545 = vmatprep.mubr.f32.mxu0 0.0
        %546 = vmatmul.mubr.f32.gmra.mxu0 %v448
        %v547 = vpop.f32.mrf.mxu0
        %v548 = vadd.f32 %v242, %v547
        %v549 = vpop.f32.mrf.mxu0
        %550 = vmatprep.mubr.f32.mxu0 0.0
        %551 = vmatmul.mubr.f32.gmra.mxu0 %v449
        %v552 = vpop.f32.mrf.mxu0
        %v553 = vadd.f32 %v242, %v552
        %v554 = vpop.f32.mrf.mxu0
        %555 = vmatprep.mubr.f32.mxu0 0.0
        %556 = vmatmul.mubr.f32.gmra.mxu0 %v450
        %v557 = vpop.f32.mrf.mxu0
        %v558 = vadd.f32 %v242, %v557
        %v559 = vpop.f32.mrf.mxu0
        %560 = vmatprep.mubr.f32.mxu0 0.0
        %561 = vmatmul.mubr.f32.gmra.mxu0 %v451
        %v562 = vpop.f32.mrf.mxu0
        %v563 = vadd.f32 %v242, %v562
        %v564 = vpop.f32.mrf.mxu0
        %565 = vmatprep.mubr.f32.mxu0 0.0
        %566 = vmatmul.mubr.f32.gmra.mxu0 %v452
        %v567 = vpop.f32.mrf.mxu0
        %v568 = vadd.f32 %v242, %v567
        %v569 = vpop.f32.mrf.mxu0
        %570 = vmatprep.mubr.f32.mxu0 0.0
        %571 = vmatmul.mubr.f32.gmra.mxu0 %v453
        %v572 = vpop.f32.mrf.mxu0
        %v573 = vadd.f32 %v242, %v572
        %v574 = vpop.f32.mrf.mxu0
        %575 = vmatprep.mubr.f32.mxu0 0.0
        %576 = vmatmul.mubr.f32.gmra.mxu0 %v454
        %v577 = vpop.f32.mrf.mxu0
        %v578 = vadd.f32 %v242, %v577
        %v579 = vpop.f32.mrf.mxu0
        %580 = vmatprep.mubr.f32.mxu0 0.0
        %581 = vmatmul.mubr.f32.gmra.mxu0 %v455
        %v582 = vpop.f32.mrf.mxu0
        %v583 = vadd.f32 %v242, %v582
        %v584 = vpop.f32.mrf.mxu0
        %585 = vdwg.mxu0
        %v586 = vtanh.pop %v523
        %v587 = vtanh.pop %v528
        %v588 = vtanh.pop %v533
        %v589 = vtanh.pop %v538
        %v590 = vtanh.pop %v543
        %v591 = vtanh.pop %v548
        %v592 = vtanh.pop %v553
        %v593 = vtanh.pop %v558
        %v594 = vtanh.pop %v563
        %v595 = vtanh.pop %v568
        %v596 = vtanh.pop %v573
        %v597 = vtanh.pop %v578
        %v598 = vtanh.pop %v583
        %v599 = vmul.f32 %v586, %v389
        %v600 = vmul.f32 %v587, %v389
        %v601 = vmul.f32 %v588, %v389
        %v602 = vmul.f32 %v589, %v389
        %v603 = vmul.f32 %v590, %v389
        %v604 = vmul.f32 %v591, %v389
        %v605 = vmul.f32 %v592, %v389
        %v606 = vmul.f32 %v593, %v389
        %v607 = vmul.f32 %v594, %v389
        %v608 = vmul.f32 %v595, %v389
        %v609 = vmul.f32 %v596, %v389
        %v610 = vmul.f32 %v597, %v389
        %v611 = vmul.f32 %v598, %v389
        %v612 = vsel %vm403, %v599, 0.0
        %613 = vadd.xlane.f32.xlu0 %v612
        %v614 = vpop.xlane.xlu0 %613
        %v615 = vsel %vm403, %v600, 0.0
        %616 = vadd.xlane.f32.xlu0 %v615
        %v617 = vpop.xlane.xlu0 %616
        %v618 = vsel %vm403, %v601, 0.0
        %619 = vadd.xlane.f32.xlu0 %v618
        %v620 = vpop.xlane.xlu0 %619
        %v621 = vsel %vm403, %v602, 0.0
        %622 = vadd.xlane.f32.xlu0 %v621
        %v623 = vpop.xlane.xlu0 %622
        %v624 = vsel %vm403, %v603, 0.0
        %625 = vadd.xlane.f32.xlu0 %v624
        %v626 = vpop.xlane.xlu0 %625
        %v627 = vsel %vm403, %v604, 0.0
        %628 = vadd.xlane.f32.xlu0 %v627
        %v629 = vpop.xlane.xlu0 %628
        %v630 = vsel %vm403, %v605, 0.0
        %631 = vadd.xlane.f32.xlu0 %v630
        %v632 = vpop.xlane.xlu0 %631
        %v633 = vsel %vm403, %v606, 0.0
        %634 = vadd.xlane.f32.xlu0 %v633
        %v635 = vpop.xlane.xlu0 %634
        %v636 = vsel %vm403, %v607, 0.0
        %637 = vadd.xlane.f32.xlu0 %v636
        %v638 = vpop.xlane.xlu0 %637
        %v639 = vsel %vm403, %v608, 0.0
        %640 = vadd.xlane.f32.xlu0 %v639
        %v641 = vpop.xlane.xlu0 %640
        %v642 = vsel %vm403, %v609, 0.0
        %643 = vadd.xlane.f32.xlu0 %v642
        %v644 = vpop.xlane.xlu0 %643
        %v645 = vsel %vm403, %v610, 0.0
        %646 = vadd.xlane.f32.xlu0 %v645
        %v647 = vpop.xlane.xlu0 %646
        %v648 = vsel %vm403, %v611, 0.0
        %649 = vadd.xlane.f32.xlu0 %v648
        %v650 = vpop.xlane.xlu0 %649
        %v651 = vld [vmem:[%s174 + $0x10] sm:$0xff]
        %v652 = vld [vmem:[%s174 + $0x30] sm:$0xff]
        %v653 = vld [vmem:[%s174 + $0x50] sm:$0xff]
        %v654 = vld [vmem:[%s174 + $0x70] sm:$0xff]
        %v655 = vld [vmem:[%s174 + $0x90] sm:$0xff]
        %v656 = vld [vmem:[%s174 + $0xb0] sm:$0xff]
        %v657 = vld [vmem:[%s174 + $0xd0] sm:$0xff]
        %v658 = vld [vmem:[%s174 + $0xf0] sm:$0xff]
        %v659 = vld [vmem:[%s174 + $0x110] sm:$0xff]
        %v660 = vld [vmem:[%s174 + $0x130] sm:$0xff]
        %v661 = vld [vmem:[%s174 + $0x150] sm:$0xff]
        %v662 = vld [vmem:[%s174 + $0x170] sm:$0xff]
        %v663 = vld [vmem:[%s174 + $0x190] sm:$0xff]
        %664 = vmatprep.subr.mxu0 0.0
        %665 = vmatpush1.msra.mxu0 %v223
        %666 = vmatprep.subr.mxu0 0.0
        %667 = vmatpush1.msra.mxu0 %v222
        %668 = vmatprep.subr.mxu0 0.0
        %669 = vmatpush1.msra.mxu0 %v221
        %670 = vmatprep.subr.mxu0 0.0
        %671 = vmatpush1.msra.mxu0 %v220
        %672 = vmatprep.subr.mxu0 0.0
        %673 = vmatpush1.msra.mxu0 %v219
        %674 = vmatprep.subr.mxu0 0.0
        %675 = vmatpush1.msra.mxu0 %v218
        %676 = vmatprep.subr.mxu0 0.0
        %677 = vmatpush1.msra.mxu0 %v217
        %678 = vmatprep.subr.mxu0 0.0
        %679 = vmatpush1.msra.mxu0 %v216
        %680 = vmatprep.subr.mxu0 0.0
        %681 = vmatpush1.msra.mxu0 %v215
        %682 = vmatprep.subr.mxu0 0.0
        %683 = vmatpush1.msra.mxu0 %v214
        %684 = vmatprep.subr.mxu0 0.0
        %685 = vmatpush1.msra.mxu0 %v213
        %686 = vmatprep.subr.mxu0 0.0
        %687 = vmatpush1.msra.mxu0 %v212
        %688 = vmatprep.subr.mxu0 0.0
        %689 = vmatpush1.msra.mxu0 %v211
        %690 = vmatprep.subr.mxu0 0.0
        %691 = vmatpush1.msra.mxu0 %v210
        %692 = vmatprep.subr.mxu0 0.0
        %693 = vmatpush1.msra.mxu0 %v209
        %694 = vmatprep.subr.mxu0 0.0
        %695 = vmatpush1.msra.mxu0 %v208
        %696 = vmatprep.subr.mxu0 0.0
        %697 = vmatpush2.msra.mxu0 0.0
        %698 = vmatprep.subr.mxu0 0.0
        %699 = vmatpush2.msra.mxu0 0.0
        %700 = vmatprep.subr.mxu0 0.0
        %701 = vmatpush2.msra.mxu0 0.0
        %702 = vmatprep.subr.mxu0 0.0
        %703 = vmatpush2.msra.mxu0 0.0
        %704 = vmatprep.subr.mxu0 0.0
        %705 = vmatpush2.msra.mxu0 0.0
        %706 = vmatprep.subr.mxu0 0.0
        %707 = vmatpush2.msra.mxu0 0.0
        %708 = vmatprep.subr.mxu0 0.0
        %709 = vmatpush2.msra.mxu0 0.0
        %710 = vmatprep.subr.mxu0 0.0
        %711 = vmatpush2.msra.mxu0 0.0
        %712 = vmatprep.subr.mxu0 0.0
        %713 = vmatpush2.msra.mxu0 0.0
        %714 = vmatprep.subr.mxu0 0.0
        %715 = vmatpush2.msra.mxu0 0.0
        %716 = vmatprep.subr.mxu0 0.0
        %717 = vmatpush2.msra.mxu0 0.0
        %718 = vmatprep.subr.mxu0 0.0
        %719 = vmatpush2.msra.mxu0 0.0
        %720 = vmatprep.subr.mxu0 0.0
        %721 = vmatpush2.msra.mxu0 0.0
        %722 = vmatprep.subr.mxu0 0.0
        %723 = vmatpush2.msra.mxu0 0.0
        %724 = vmatprep.subr.mxu0 0.0
        %725 = vmatpush2.msra.mxu0 0.0
        %726 = vmatprep.subr.mxu0 0.0
        %727 = vmatpush2.msra.mxu0 0.0
        %728 = vmatprep.mubr.f32.mxu0 0.0
        %729 = vmatmul.mubr.f32.gmra.mxu0 %v651
        %v730 = vpop.f32.mrf.mxu0
        %v731 = vadd.f32 %v242, %v730
        %v732 = vpop.f32.mrf.mxu0
        %733 = vmatprep.mubr.f32.mxu0 0.0
        %734 = vmatmul.mubr.f32.gmra.mxu0 %v652
        %v735 = vpop.f32.mrf.mxu0
        %v736 = vadd.f32 %v242, %v735
        %v737 = vpop.f32.mrf.mxu0
        %738 = vmatprep.mubr.f32.mxu0 0.0
        %739 = vmatmul.mubr.f32.gmra.mxu0 %v653
        %v740 = vpop.f32.mrf.mxu0
        %v741 = vadd.f32 %v242, %v740
        %v742 = vpop.f32.mrf.mxu0
        %743 = vmatprep.mubr.f32.mxu0 0.0
        %744 = vmatmul.mubr.f32.gmra.mxu0 %v654
        %v745 = vpop.f32.mrf.mxu0
        %v746 = vadd.f32 %v242, %v745
        %v747 = vpop.f32.mrf.mxu0
        %748 = vmatprep.mubr.f32.mxu0 0.0
        %749 = vmatmul.mubr.f32.gmra.mxu0 %v655
        %v750 = vpop.f32.mrf.mxu0
        %v751 = vadd.f32 %v242, %v750
        %v752 = vpop.f32.mrf.mxu0
        %753 = vmatprep.mubr.f32.mxu0 0.0
        %754 = vmatmul.mubr.f32.gmra.mxu0 %v656
        %v755 = vpop.f32.mrf.mxu0
        %v756 = vadd.f32 %v242, %v755
        %v757 = vpop.f32.mrf.mxu0
        %758 = vmatprep.mubr.f32.mxu0 0.0
        %759 = vmatmul.mubr.f32.gmra.mxu0 %v657
        %v760 = vpop.f32.mrf.mxu0
        %v761 = vadd.f32 %v242, %v760
        %v762 = vpop.f32.mrf.mxu0
        %763 = vmatprep.mubr.f32.mxu0 0.0
        %764 = vmatmul.mubr.f32.gmra.mxu0 %v658
        %v765 = vpop.f32.mrf.mxu0
        %v766 = vadd.f32 %v242, %v765
        %v767 = vpop.f32.mrf.mxu0
        %768 = vmatprep.mubr.f32.mxu0 0.0
        %769 = vmatmul.mubr.f32.gmra.mxu0 %v659
        %v770 = vpop.f32.mrf.mxu0
        %v771 = vadd.f32 %v242, %v770
        %v772 = vpop.f32.mrf.mxu0
        %773 = vmatprep.mubr.f32.mxu0 0.0
        %774 = vmatmul.mubr.f32.gmra.mxu0 %v660
        %v775 = vpop.f32.mrf.mxu0
        %v776 = vadd.f32 %v242, %v775
        %v777 = vpop.f32.mrf.mxu0
        %778 = vmatprep.mubr.f32.mxu0 0.0
        %779 = vmatmul.mubr.f32.gmra.mxu0 %v661
        %v780 = vpop.f32.mrf.mxu0
        %v781 = vadd.f32 %v242, %v780
        %v782 = vpop.f32.mrf.mxu0
        %783 = vmatprep.mubr.f32.mxu0 0.0
        %784 = vmatmul.mubr.f32.gmra.mxu0 %v662
        %v785 = vpop.f32.mrf.mxu0
        %v786 = vadd.f32 %v242, %v785
        %v787 = vpop.f32.mrf.mxu0
        %788 = vmatprep.mubr.f32.mxu0 0.0
        %789 = vmatmul.mubr.f32.gmra.mxu0 %v663
        %v790 = vpop.f32.mrf.mxu0
        %v791 = vadd.f32 %v242, %v790
        %v792 = vpop.f32.mrf.mxu0
        %793 = vdwg.mxu0
        %v794 = vtanh.pop %v731
        %v795 = vtanh.pop %v736
        %v796 = vtanh.pop %v741
        %v797 = vtanh.pop %v746
        %v798 = vtanh.pop %v751
        %v799 = vtanh.pop %v756
        %v800 = vtanh.pop %v761
        %v801 = vtanh.pop %v766
        %v802 = vtanh.pop %v771
        %v803 = vtanh.pop %v776
        %v804 = vtanh.pop %v781
        %v805 = vtanh.pop %v786
        %v806 = vtanh.pop %v791
        %v807 = vmul.f32 %v794, %v389
        %v808 = vmul.f32 %v795, %v389
        %v809 = vmul.f32 %v796, %v389
        %v810 = vmul.f32 %v797, %v389
        %v811 = vmul.f32 %v798, %v389
        %v812 = vmul.f32 %v799, %v389
        %v813 = vmul.f32 %v800, %v389
        %v814 = vmul.f32 %v801, %v389
        %v815 = vmul.f32 %v802, %v389
        %v816 = vmul.f32 %v803, %v389
        %v817 = vmul.f32 %v804, %v389
        %v818 = vmul.f32 %v805, %v389
        %v819 = vmul.f32 %v806, %v389
        %v820 = vsel %vm403, %v807, 0.0
        %821 = vadd.xlane.f32.xlu0 %v820
        %v822 = vpop.xlane.xlu0 %821
        %v823 = vsel %vm403, %v808, 0.0
        %824 = vadd.xlane.f32.xlu0 %v823
        %v825 = vpop.xlane.xlu0 %824
        %v826 = vsel %vm403, %v809, 0.0
        %827 = vadd.xlane.f32.xlu0 %v826
        %v828 = vpop.xlane.xlu0 %827
        %v829 = vsel %vm403, %v810, 0.0
        %830 = vadd.xlane.f32.xlu0 %v829
        %v831 = vpop.xlane.xlu0 %830
        %v832 = vsel %vm403, %v811, 0.0
        %833 = vadd.xlane.f32.xlu0 %v832
        %v834 = vpop.xlane.xlu0 %833
        %v835 = vsel %vm403, %v812, 0.0
        %836 = vadd.xlane.f32.xlu0 %v835
        %v837 = vpop.xlane.xlu0 %836
        %v838 = vsel %vm403, %v813, 0.0
        %839 = vadd.xlane.f32.xlu0 %v838
        %v840 = vpop.xlane.xlu0 %839
        %v841 = vsel %vm403, %v814, 0.0
        %842 = vadd.xlane.f32.xlu0 %v841
        %v843 = vpop.xlane.xlu0 %842
        %v844 = vsel %vm403, %v815, 0.0
        %845 = vadd.xlane.f32.xlu0 %v844
        %v846 = vpop.xlane.xlu0 %845
        %v847 = vsel %vm403, %v816, 0.0
        %848 = vadd.xlane.f32.xlu0 %v847
        %v849 = vpop.xlane.xlu0 %848
        %v850 = vsel %vm403, %v817, 0.0
        %851 = vadd.xlane.f32.xlu0 %v850
        %v852 = vpop.xlane.xlu0 %851
        %v853 = vsel %vm403, %v818, 0.0
        %854 = vadd.xlane.f32.xlu0 %v853
        %v855 = vpop.xlane.xlu0 %854
        %v856 = vsel %vm403, %v819, 0.0
        %857 = vadd.xlane.f32.xlu0 %v856
        %v858 = vpop.xlane.xlu0 %857
        %v859 = vld [vmem:[%s174 + $0x18] sm:$0xff]
        %v860 = vld [vmem:[%s174 + $0x38] sm:$0xff]
        %v861 = vld [vmem:[%s174 + $0x58] sm:$0xff]
        %v862 = vld [vmem:[%s174 + $0x78] sm:$0xff]
        %v863 = vld [vmem:[%s174 + $0x98] sm:$0xff]
        %v864 = vld [vmem:[%s174 + $0xb8] sm:$0xff]
        %v865 = vld [vmem:[%s174 + $0xd8] sm:$0xff]
        %v866 = vld [vmem:[%s174 + $0xf8] sm:$0xff]
        %v867 = vld [vmem:[%s174 + $0x118] sm:$0xff]
        %v868 = vld [vmem:[%s174 + $0x138] sm:$0xff]
        %v869 = vld [vmem:[%s174 + $0x158] sm:$0xff]
        %v870 = vld [vmem:[%s174 + $0x178] sm:$0xff]
        %v871 = vld [vmem:[%s174 + $0x198] sm:$0xff]
        %872 = vmatprep.subr.mxu0 0.0
        %873 = vmatpush1.msra.mxu0 %v223
        %874 = vmatprep.subr.mxu0 0.0
        %875 = vmatpush1.msra.mxu0 %v222
        %876 = vmatprep.subr.mxu0 0.0
        %877 = vmatpush1.msra.mxu0 %v221
        %878 = vmatprep.subr.mxu0 0.0
        %879 = vmatpush1.msra.mxu0 %v220
        %880 = vmatprep.subr.mxu0 0.0
        %881 = vmatpush1.msra.mxu0 %v219
        %882 = vmatprep.subr.mxu0 0.0
        %883 = vmatpush1.msra.mxu0 %v218
        %884 = vmatprep.subr.mxu0 0.0
        %885 = vmatpush1.msra.mxu0 %v217
        %886 = vmatprep.subr.mxu0 0.0
        %887 = vmatpush1.msra.mxu0 %v216
        %888 = vmatprep.subr.mxu0 0.0
        %889 = vmatpush1.msra.mxu0 %v215
        %890 = vmatprep.subr.mxu0 0.0
        %891 = vmatpush1.msra.mxu0 %v214
        %892 = vmatprep.subr.mxu0 0.0
        %893 = vmatpush1.msra.mxu0 %v213
        %894 = vmatprep.subr.mxu0 0.0
        %895 = vmatpush1.msra.mxu0 %v212
        %896 = vmatprep.subr.mxu0 0.0
        %897 = vmatpush1.msra.mxu0 %v211
        %898 = vmatprep.subr.mxu0 0.0
        %899 = vmatpush1.msra.mxu0 %v210
        %900 = vmatprep.subr.mxu0 0.0
        %901 = vmatpush1.msra.mxu0 %v209
        %902 = vmatprep.subr.mxu0 0.0
        %903 = vmatpush1.msra.mxu0 %v208
        %904 = vmatprep.subr.mxu0 0.0
        %905 = vmatpush2.msra.mxu0 0.0
        %906 = vmatprep.subr.mxu0 0.0
        %907 = vmatpush2.msra.mxu0 0.0
        %908 = vmatprep.subr.mxu0 0.0
        %909 = vmatpush2.msra.mxu0 0.0
        %910 = vmatprep.subr.mxu0 0.0
        %911 = vmatpush2.msra.mxu0 0.0
        %912 = vmatprep.subr.mxu0 0.0
        %913 = vmatpush2.msra.mxu0 0.0
        %914 = vmatprep.subr.mxu0 0.0
        %915 = vmatpush2.msra.mxu0 0.0
        %916 = vmatprep.subr.mxu0 0.0
        %917 = vmatpush2.msra.mxu0 0.0
        %918 = vmatprep.subr.mxu0 0.0
        %919 = vmatpush2.msra.mxu0 0.0
        %920 = vmatprep.subr.mxu0 0.0
        %921 = vmatpush2.msra.mxu0 0.0
        %922 = vmatprep.subr.mxu0 0.0
        %923 = vmatpush2.msra.mxu0 0.0
        %924 = vmatprep.subr.mxu0 0.0
        %925 = vmatpush2.msra.mxu0 0.0
        %926 = vmatprep.subr.mxu0 0.0
        %927 = vmatpush2.msra.mxu0 0.0
        %928 = vmatprep.subr.mxu0 0.0
        %929 = vmatpush2.msra.mxu0 0.0
        %930 = vmatprep.subr.mxu0 0.0
        %931 = vmatpush2.msra.mxu0 0.0
        %932 = vmatprep.subr.mxu0 0.0
        %933 = vmatpush2.msra.mxu0 0.0
        %934 = vmatprep.subr.mxu0 0.0
        %935 = vmatpush2.msra.mxu0 0.0
        %936 = vmatprep.mubr.f32.mxu0 0.0
        %937 = vmatmul.mubr.f32.gmra.mxu0 %v859
        %v938 = vpop.f32.mrf.mxu0
        %v939 = vadd.f32 %v242, %v938
        %v940 = vpop.f32.mrf.mxu0
        %941 = vmatprep.mubr.f32.mxu0 0.0
        %942 = vmatmul.mubr.f32.gmra.mxu0 %v860
        %v943 = vpop.f32.mrf.mxu0
        %v944 = vadd.f32 %v242, %v943
        %v945 = vpop.f32.mrf.mxu0
        %946 = vmatprep.mubr.f32.mxu0 0.0
        %947 = vmatmul.mubr.f32.gmra.mxu0 %v861
        %v948 = vpop.f32.mrf.mxu0
        %v949 = vadd.f32 %v242, %v948
        %v950 = vpop.f32.mrf.mxu0
        %951 = vmatprep.mubr.f32.mxu0 0.0
        %952 = vmatmul.mubr.f32.gmra.mxu0 %v862
        %v953 = vpop.f32.mrf.mxu0
        %v954 = vadd.f32 %v242, %v953
        %v955 = vpop.f32.mrf.mxu0
        %956 = vmatprep.mubr.f32.mxu0 0.0
        %957 = vmatmul.mubr.f32.gmra.mxu0 %v863
        %v958 = vpop.f32.mrf.mxu0
        %v959 = vadd.f32 %v242, %v958
        %v960 = vpop.f32.mrf.mxu0
        %961 = vmatprep.mubr.f32.mxu0 0.0
        %962 = vmatmul.mubr.f32.gmra.mxu0 %v864
        %v963 = vpop.f32.mrf.mxu0
        %v964 = vadd.f32 %v242, %v963
        %v965 = vpop.f32.mrf.mxu0
        %966 = vmatprep.mubr.f32.mxu0 0.0
        %967 = vmatmul.mubr.f32.gmra.mxu0 %v865
        %v968 = vpop.f32.mrf.mxu0
        %v969 = vadd.f32 %v242, %v968
        %v970 = vpop.f32.mrf.mxu0
        %971 = vmatprep.mubr.f32.mxu0 0.0
        %972 = vmatmul.mubr.f32.gmra.mxu0 %v866
        %v973 = vpop.f32.mrf.mxu0
        %v974 = vadd.f32 %v242, %v973
        %v975 = vpop.f32.mrf.mxu0
        %976 = vmatprep.mubr.f32.mxu0 0.0
        %977 = vmatmul.mubr.f32.gmra.mxu0 %v867
        %v978 = vpop.f32.mrf.mxu0
        %v979 = vadd.f32 %v242, %v978
        %v980 = vpop.f32.mrf.mxu0
        %981 = vmatprep.mubr.f32.mxu0 0.0
        %982 = vmatmul.mubr.f32.gmra.mxu0 %v868
        %v983 = vpop.f32.mrf.mxu0
        %v984 = vadd.f32 %v242, %v983
        %v985 = vpop.f32.mrf.mxu0
        %986 = vmatprep.mubr.f32.mxu0 0.0
        %987 = vmatmul.mubr.f32.gmra.mxu0 %v869
        %v988 = vpop.f32.mrf.mxu0
        %v989 = vadd.f32 %v242, %v988
        %v990 = vpop.f32.mrf.mxu0
        %991 = vmatprep.mubr.f32.mxu0 0.0
        %992 = vmatmul.mubr.f32.gmra.mxu0 %v870
        %v993 = vpop.f32.mrf.mxu0
        %v994 = vadd.f32 %v242, %v993
        %v995 = vpop.f32.mrf.mxu0
        %996 = vmatprep.mubr.f32.mxu0 0.0
        %997 = vmatmul.mubr.f32.gmra.mxu0 %v871
        %v998 = vpop.f32.mrf.mxu0
        %v999 = vadd.f32 %v242, %v998
        %v1000 = vpop.f32.mrf.mxu0
        %1001 = vdwg.mxu0
        %v1002 = vtanh.pop %v939
        %v1003 = vtanh.pop %v944
        %v1004 = vtanh.pop %v949
        %v1005 = vtanh.pop %v954
        %v1006 = vtanh.pop %v959
        %v1007 = vtanh.pop %v964
        %v1008 = vtanh.pop %v969
        %v1009 = vtanh.pop %v974
        %v1010 = vtanh.pop %v979
        %v1011 = vtanh.pop %v984
        %v1012 = vtanh.pop %v989
        %v1013 = vtanh.pop %v994
        %v1014 = vtanh.pop %v999
        %v1015 = vmul.f32 %v1002, %v389
        %v1016 = vmul.f32 %v1003, %v389
        %v1017 = vmul.f32 %v1004, %v389
        %v1018 = vmul.f32 %v1005, %v389
        %v1019 = vmul.f32 %v1006, %v389
        %v1020 = vmul.f32 %v1007, %v389
        %v1021 = vmul.f32 %v1008, %v389
        %v1022 = vmul.f32 %v1009, %v389
        %v1023 = vmul.f32 %v1010, %v389
        %v1024 = vmul.f32 %v1011, %v389
        %v1025 = vmul.f32 %v1012, %v389
        %v1026 = vmul.f32 %v1013, %v389
        %v1027 = vmul.f32 %v1014, %v389
        %v1028 = vsel %vm403, %v1015, 0.0
        %1029 = vadd.xlane.f32.xlu0 %v1028
        %v1030 = vpop.xlane.xlu0 %1029
        %v1031 = vsel %vm403, %v1016, 0.0
        %1032 = vadd.xlane.f32.xlu0 %v1031
        %v1033 = vpop.xlane.xlu0 %1032
        %v1034 = vsel %vm403, %v1017, 0.0
        %1035 = vadd.xlane.f32.xlu0 %v1034
        %v1036 = vpop.xlane.xlu0 %1035
        %v1037 = vsel %vm403, %v1018, 0.0
        %1038 = vadd.xlane.f32.xlu0 %v1037
        %v1039 = vpop.xlane.xlu0 %1038
        %v1040 = vsel %vm403, %v1019, 0.0
        %1041 = vadd.xlane.f32.xlu0 %v1040
        %v1042 = vpop.xlane.xlu0 %1041
        %v1043 = vsel %vm403, %v1020, 0.0
        %1044 = vadd.xlane.f32.xlu0 %v1043
        %v1045 = vpop.xlane.xlu0 %1044
        %v1046 = vsel %vm403, %v1021, 0.0
        %1047 = vadd.xlane.f32.xlu0 %v1046
        %v1048 = vpop.xlane.xlu0 %1047
        %v1049 = vsel %vm403, %v1022, 0.0
        %1050 = vadd.xlane.f32.xlu0 %v1049
        %v1051 = vpop.xlane.xlu0 %1050
        %v1052 = vsel %vm403, %v1023, 0.0
        %1053 = vadd.xlane.f32.xlu0 %v1052
        %v1054 = vpop.xlane.xlu0 %1053
        %v1055 = vsel %vm403, %v1024, 0.0
        %1056 = vadd.xlane.f32.xlu0 %v1055
        %v1057 = vpop.xlane.xlu0 %1056
        %v1058 = vsel %vm403, %v1025, 0.0
        %1059 = vadd.xlane.f32.xlu0 %v1058
        %v1060 = vpop.xlane.xlu0 %1059
        %v1061 = vsel %vm403, %v1026, 0.0
        %1062 = vadd.xlane.f32.xlu0 %v1061
        %v1063 = vpop.xlane.xlu0 %1062
        %v1064 = vsel %vm403, %v1027, 0.0
        %1065 = vadd.xlane.f32.xlu0 %v1064
        %v1066 = vpop.xlane.xlu0 %1065
        %v1067 = vmax.f32 %v406, %v614
        %v1068 = vmax.f32 %v409, %v617
        %v1069 = vmax.f32 %v412, %v620
        %v1070 = vmax.f32 %v415, %v623
        %v1071 = vmax.f32 %v418, %v626
        %v1072 = vmax.f32 %v421, %v629
        %v1073 = vmax.f32 %v424, %v632
        %v1074 = vmax.f32 %v427, %v635
        %v1075 = vmax.f32 %v430, %v638
        %v1076 = vmax.f32 %v433, %v641
        %v1077 = vmax.f32 %v436, %v644
        %v1078 = vmax.f32 %v439, %v647
        %v1079 = vmax.f32 %v442, %v650
        %v1080 = vmax.f32 %v1067, %v822
        %v1081 = vmax.f32 %v1068, %v825
        %v1082 = vmax.f32 %v1069, %v828
        %v1083 = vmax.f32 %v1070, %v831
        %v1084 = vmax.f32 %v1071, %v834
        %v1085 = vmax.f32 %v1072, %v837
        %v1086 = vmax.f32 %v1073, %v840
        %v1087 = vmax.f32 %v1074, %v843
        %v1088 = vmax.f32 %v1075, %v846
        %v1089 = vmax.f32 %v1076, %v849
        %v1090 = vmax.f32 %v1077, %v852
        %v1091 = vmax.f32 %v1078, %v855
        %v1092 = vmax.f32 %v1079, %v858
        %v1093 = vmax.f32 %v1080, %v1030
        %v1094 = vmax.f32 %v1081, %v1033
        %v1095 = vmax.f32 %v1082, %v1036
        %v1096 = vmax.f32 %v1083, %v1039
        %v1097 = vmax.f32 %v1084, %v1042
        %v1098 = vmax.f32 %v1085, %v1045
        %v1099 = vmax.f32 %v1086, %v1048
        %v1100 = vmax.f32 %v1087, %v1051
        %v1101 = vmax.f32 %v1088, %v1054
        %v1102 = vmax.f32 %v1089, %v1057
        %v1103 = vmax.f32 %v1090, %v1060
        %v1104 = vmax.f32 %v1091, %v1063
        %v1105 = vmax.f32 %v1092, %v1066
        %v1106 = vsub.f32 %v406, %v1093
        %v1107 = vsub.f32 %v409, %v1094
        %v1108 = vsub.f32 %v412, %v1095
        %v1109 = vsub.f32 %v415, %v1096
        %v1110 = vsub.f32 %v418, %v1097
        %v1111 = vsub.f32 %v421, %v1098
        %v1112 = vsub.f32 %v424, %v1099
        %v1113 = vsub.f32 %v427, %v1100
        %v1114 = vsub.f32 %v430, %v1101
        %v1115 = vsub.f32 %v433, %v1102
        %v1116 = vsub.f32 %v436, %v1103
        %v1117 = vsub.f32 %v439, %v1104
        %v1118 = vsub.f32 %v442, %v1105
        %v1119 = vmul.f32 %v1106, 1.442695
        %v1120 = vpow.pop %v1119
        %v1121 = vmul.f32 %v1107, 1.442695
        %v1122 = vpow.pop %v1121
        %v1123 = vmul.f32 %v1108, 1.442695
        %v1124 = vpow.pop %v1123
        %v1125 = vmul.f32 %v1109, 1.442695
        %v1126 = vpow.pop %v1125
        %v1127 = vmul.f32 %v1110, 1.442695
        %v1128 = vpow.pop %v1127
        %v1129 = vmul.f32 %v1111, 1.442695
        %v1130 = vpow.pop %v1129
        %v1131 = vmul.f32 %v1112, 1.442695
        %v1132 = vpow.pop %v1131
        %v1133 = vmul.f32 %v1113, 1.442695
        %v1134 = vpow.pop %v1133
        %v1135 = vmul.f32 %v1114, 1.442695
        %v1136 = vpow.pop %v1135
        %v1137 = vmul.f32 %v1115, 1.442695
        %v1138 = vpow.pop %v1137
        %v1139 = vmul.f32 %v1116, 1.442695
        %v1140 = vpow.pop %v1139
        %v1141 = vmul.f32 %v1117, 1.442695
        %v1142 = vpow.pop %v1141
        %v1143 = vmul.f32 %v1118, 1.442695
        %v1144 = vpow.pop %v1143
        %v1145 = vsub.f32 %v614, %v1093
        %v1146 = vsub.f32 %v617, %v1094
        %v1147 = vsub.f32 %v620, %v1095
        %v1148 = vsub.f32 %v623, %v1096
        %v1149 = vsub.f32 %v626, %v1097
        %v1150 = vsub.f32 %v629, %v1098
        %v1151 = vsub.f32 %v632, %v1099
        %v1152 = vsub.f32 %v635, %v1100
        %v1153 = vsub.f32 %v638, %v1101
        %v1154 = vsub.f32 %v641, %v1102
        %v1155 = vsub.f32 %v644, %v1103
        %v1156 = vsub.f32 %v647, %v1104
        %v1157 = vsub.f32 %v650, %v1105
        %v1158 = vmul.f32 %v1145, 1.442695
        %v1159 = vpow.pop %v1158
        %v1160 = vmul.f32 %v1146, 1.442695
        %v1161 = vpow.pop %v1160
        %v1162 = vmul.f32 %v1147, 1.442695
        %v1163 = vpow.pop %v1162
        %v1164 = vmul.f32 %v1148, 1.442695
        %v1165 = vpow.pop %v1164
        %v1166 = vmul.f32 %v1149, 1.442695
        %v1167 = vpow.pop %v1166
        %v1168 = vmul.f32 %v1150, 1.442695
        %v1169 = vpow.pop %v1168
        %v1170 = vmul.f32 %v1151, 1.442695
        %v1171 = vpow.pop %v1170
        %v1172 = vmul.f32 %v1152, 1.442695
        %v1173 = vpow.pop %v1172
        %v1174 = vmul.f32 %v1153, 1.442695
        %v1175 = vpow.pop %v1174
        %v1176 = vmul.f32 %v1154, 1.442695
        %v1177 = vpow.pop %v1176
        %v1178 = vmul.f32 %v1155, 1.442695
        %v1179 = vpow.pop %v1178
        %v1180 = vmul.f32 %v1156, 1.442695
        %v1181 = vpow.pop %v1180
        %v1182 = vmul.f32 %v1157, 1.442695
        %v1183 = vpow.pop %v1182
        %v1184 = vsub.f32 %v822, %v1093
        %v1185 = vsub.f32 %v825, %v1094
        %v1186 = vsub.f32 %v828, %v1095
        %v1187 = vsub.f32 %v831, %v1096
        %v1188 = vsub.f32 %v834, %v1097
        %v1189 = vsub.f32 %v837, %v1098
        %v1190 = vsub.f32 %v840, %v1099
        %v1191 = vsub.f32 %v843, %v1100
        %v1192 = vsub.f32 %v846, %v1101
        %v1193 = vsub.f32 %v849, %v1102
        %v1194 = vsub.f32 %v852, %v1103
        %v1195 = vsub.f32 %v855, %v1104
        %v1196 = vsub.f32 %v858, %v1105
        %v1197 = vmul.f32 %v1184, 1.442695
        %v1198 = vpow.pop %v1197
        %v1199 = vmul.f32 %v1185, 1.442695
        %v1200 = vpow.pop %v1199
        %v1201 = vmul.f32 %v1186, 1.442695
        %v1202 = vpow.pop %v1201
        %v1203 = vmul.f32 %v1187, 1.442695
        %v1204 = vpow.pop %v1203
        %v1205 = vmul.f32 %v1188, 1.442695
        %v1206 = vpow.pop %v1205
        %v1207 = vmul.f32 %v1189, 1.442695
        %v1208 = vpow.pop %v1207
        %v1209 = vmul.f32 %v1190, 1.442695
        %v1210 = vpow.pop %v1209
        %v1211 = vmul.f32 %v1191, 1.442695
        %v1212 = vpow.pop %v1211
        %v1213 = vmul.f32 %v1192, 1.442695
        %v1214 = vpow.pop %v1213
        %v1215 = vmul.f32 %v1193, 1.442695
        %v1216 = vpow.pop %v1215
        %v1217 = vmul.f32 %v1194, 1.442695
        %v1218 = vpow.pop %v1217
        %v1219 = vmul.f32 %v1195, 1.442695
        %v1220 = vpow.pop %v1219
        %v1221 = vmul.f32 %v1196, 1.442695
        %v1222 = vpow.pop %v1221
        %v1223 = vsub.f32 %v1030, %v1093
        %v1224 = vsub.f32 %v1033, %v1094
        %v1225 = vsub.f32 %v1036, %v1095
        %v1226 = vsub.f32 %v1039, %v1096
        %v1227 = vsub.f32 %v1042, %v1097
        %v1228 = vsub.f32 %v1045, %v1098
        %v1229 = vsub.f32 %v1048, %v1099
        %v1230 = vsub.f32 %v1051, %v1100
        %v1231 = vsub.f32 %v1054, %v1101
        %v1232 = vsub.f32 %v1057, %v1102
        %v1233 = vsub.f32 %v1060, %v1103
        %v1234 = vsub.f32 %v1063, %v1104
        %v1235 = vsub.f32 %v1066, %v1105
        %v1236 = vmul.f32 %v1223, 1.442695
        %v1237 = vpow.pop %v1236
        %v1238 = vmul.f32 %v1224, 1.442695
        %v1239 = vpow.pop %v1238
        %v1240 = vmul.f32 %v1225, 1.442695
        %v1241 = vpow.pop %v1240
        %v1242 = vmul.f32 %v1226, 1.442695
        %v1243 = vpow.pop %v1242
        %v1244 = vmul.f32 %v1227, 1.442695
        %v1245 = vpow.pop %v1244
        %v1246 = vmul.f32 %v1228, 1.442695
        %v1247 = vpow.pop %v1246
        %v1248 = vmul.f32 %v1229, 1.442695
        %v1249 = vpow.pop %v1248
        %v1250 = vmul.f32 %v1230, 1.442695
        %v1251 = vpow.pop %v1250
        %v1252 = vmul.f32 %v1231, 1.442695
        %v1253 = vpow.pop %v1252
        %v1254 = vmul.f32 %v1232, 1.442695
        %v1255 = vpow.pop %v1254
        %v1256 = vmul.f32 %v1233, 1.442695
        %v1257 = vpow.pop %v1256
        %v1258 = vmul.f32 %v1234, 1.442695
        %v1259 = vpow.pop %v1258
        %v1260 = vmul.f32 %v1235, 1.442695
        %v1261 = vpow.pop %v1260
        %v1262 = vadd.f32 %v1120, %v1159
        %v1263 = vadd.f32 %v1122, %v1161
        %v1264 = vadd.f32 %v1124, %v1163
        %v1265 = vadd.f32 %v1126, %v1165
        %v1266 = vadd.f32 %v1128, %v1167
        %v1267 = vadd.f32 %v1130, %v1169
        %v1268 = vadd.f32 %v1132, %v1171
        %v1269 = vadd.f32 %v1134, %v1173
        %v1270 = vadd.f32 %v1136, %v1175
        %v1271 = vadd.f32 %v1138, %v1177
        %v1272 = vadd.f32 %v1140, %v1179
        %v1273 = vadd.f32 %v1142, %v1181
        %v1274 = vadd.f32 %v1144, %v1183
        %v1275 = vadd.f32 %v1262, %v1198
        %v1276 = vadd.f32 %v1263, %v1200
        %v1277 = vadd.f32 %v1264, %v1202
        %v1278 = vadd.f32 %v1265, %v1204
        %v1279 = vadd.f32 %v1266, %v1206
        %v1280 = vadd.f32 %v1267, %v1208
        %v1281 = vadd.f32 %v1268, %v1210
        %v1282 = vadd.f32 %v1269, %v1212
        %v1283 = vadd.f32 %v1270, %v1214
        %v1284 = vadd.f32 %v1271, %v1216
        %v1285 = vadd.f32 %v1272, %v1218
        %v1286 = vadd.f32 %v1273, %v1220
        %v1287 = vadd.f32 %v1274, %v1222
        %v1288 = vadd.f32 %v1275, %v1237
        %v1289 = vadd.f32 %v1276, %v1239
        %v1290 = vadd.f32 %v1277, %v1241
        %v1291 = vadd.f32 %v1278, %v1243
        %v1292 = vadd.f32 %v1279, %v1245
        %v1293 = vadd.f32 %v1280, %v1247
        %v1294 = vadd.f32 %v1281, %v1249
        %v1295 = vadd.f32 %v1282, %v1251
        %v1296 = vadd.f32 %v1283, %v1253
        %v1297 = vadd.f32 %v1284, %v1255
        %v1298 = vadd.f32 %v1285, %v1257
        %v1299 = vadd.f32 %v1286, %v1259
        %v1300 = vadd.f32 %v1287, %v1261
        %v1301 = vrcp.pop %v1288
        %v1302 = vmul.f32 1.0, %v1301
        %v1303 = vrcp.pop %v1289
        %v1304 = vmul.f32 1.0, %v1303
        %v1305 = vrcp.pop %v1290
        %v1306 = vmul.f32 1.0, %v1305
        %v1307 = vrcp.pop %v1291
        %v1308 = vmul.f32 1.0, %v1307
        %v1309 = vrcp.pop %v1292
        %v1310 = vmul.f32 1.0, %v1309
        %v1311 = vrcp.pop %v1293
        %v1312 = vmul.f32 1.0, %v1311
        %v1313 = vrcp.pop %v1294
        %v1314 = vmul.f32 1.0, %v1313
        %v1315 = vrcp.pop %v1295
        %v1316 = vmul.f32 1.0, %v1315
        %v1317 = vrcp.pop %v1296
        %v1318 = vmul.f32 1.0, %v1317
        %v1319 = vrcp.pop %v1297
        %v1320 = vmul.f32 1.0, %v1319
        %v1321 = vrcp.pop %v1298
        %v1322 = vmul.f32 1.0, %v1321
        %v1323 = vrcp.pop %v1299
        %v1324 = vmul.f32 1.0, %v1323
        %v1325 = vrcp.pop %v1300
        %v1326 = vmul.f32 1.0, %v1325
        %v1327 = vmul.f32 %v1120, %v1302
        %v1328 = vmul.f32 %v1122, %v1304
        %v1329 = vmul.f32 %v1124, %v1306
        %v1330 = vmul.f32 %v1126, %v1308
        %v1331 = vmul.f32 %v1128, %v1310
        %v1332 = vmul.f32 %v1130, %v1312
        %v1333 = vmul.f32 %v1132, %v1314
        %v1334 = vmul.f32 %v1134, %v1316
        %v1335 = vmul.f32 %v1136, %v1318
        %v1336 = vmul.f32 %v1138, %v1320
        %v1337 = vmul.f32 %v1140, %v1322
        %v1338 = vmul.f32 %v1142, %v1324
        %v1339 = vmul.f32 %v1144, %v1326
        %v1340 = vmul.f32 %v1327, %v226
        %v1341 = vmul.f32 %v1328, %v227
        %v1342 = vmul.f32 %v1329, %v228
        %v1343 = vmul.f32 %v1330, %v229
        %v1344 = vmul.f32 %v1331, %v230
        %v1345 = vmul.f32 %v1332, %v231
        %v1346 = vmul.f32 %v1333, %v232
        %v1347 = vmul.f32 %v1334, %v233
        %v1348 = vmul.f32 %v1335, %v234
        %v1349 = vmul.f32 %v1336, %v235
        %v1350 = vmul.f32 %v1337, %v236
        %v1351 = vmul.f32 %v1338, %v237
        %v1352 = vmul.f32 %v1339, %v238
        %v1353 = vmul.f32 %v1159, %v1302
        %v1354 = vmul.f32 %v1161, %v1304
        %v1355 = vmul.f32 %v1163, %v1306
        %v1356 = vmul.f32 %v1165, %v1308
        %v1357 = vmul.f32 %v1167, %v1310
        %v1358 = vmul.f32 %v1169, %v1312
        %v1359 = vmul.f32 %v1171, %v1314
        %v1360 = vmul.f32 %v1173, %v1316
        %v1361 = vmul.f32 %v1175, %v1318
        %v1362 = vmul.f32 %v1177, %v1320
        %v1363 = vmul.f32 %v1179, %v1322
        %v1364 = vmul.f32 %v1181, %v1324
        %v1365 = vmul.f32 %v1183, %v1326
        %v1366 = vmul.f32 %v1353, %v443
        %v1367 = vmul.f32 %v1354, %v444
        %v1368 = vmul.f32 %v1355, %v445
        %v1369 = vmul.f32 %v1356, %v446
        %v1370 = vmul.f32 %v1357, %v447
        %v1371 = vmul.f32 %v1358, %v448
        %v1372 = vmul.f32 %v1359, %v449
        %v1373 = vmul.f32 %v1360, %v450
        %v1374 = vmul.f32 %v1361, %v451
        %v1375 = vmul.f32 %v1362, %v452
        %v1376 = vmul.f32 %v1363, %v453
        %v1377 = vmul.f32 %v1364, %v454
        %v1378 = vmul.f32 %v1365, %v455
        %v1379 = vadd.f32 %v1340, %v1366
        %v1380 = vadd.f32 %v1341, %v1367
        %v1381 = vadd.f32 %v1342, %v1368
        %v1382 = vadd.f32 %v1343, %v1369
        %v1383 = vadd.f32 %v1344, %v1370
        %v1384 = vadd.f32 %v1345, %v1371
        %v1385 = vadd.f32 %v1346, %v1372
        %v1386 = vadd.f32 %v1347, %v1373
        %v1387 = vadd.f32 %v1348, %v1374
        %v1388 = vadd.f32 %v1349, %v1375
        %v1389 = vadd.f32 %v1350, %v1376
        %v1390 = vadd.f32 %v1351, %v1377
        %v1391 = vadd.f32 %v1352, %v1378
        %v1392 = vmul.f32 %v1198, %v1302
        %v1393 = vmul.f32 %v1200, %v1304
        %v1394 = vmul.f32 %v1202, %v1306
        %v1395 = vmul.f32 %v1204, %v1308
        %v1396 = vmul.f32 %v1206, %v1310
        %v1397 = vmul.f32 %v1208, %v1312
        %v1398 = vmul.f32 %v1210, %v1314
        %v1399 = vmul.f32 %v1212, %v1316
        %v1400 = vmul.f32 %v1214, %v1318
        %v1401 = vmul.f32 %v1216, %v1320
        %v1402 = vmul.f32 %v1218, %v1322
        %v1403 = vmul.f32 %v1220, %v1324
        %v1404 = vmul.f32 %v1222, %v1326
        %v1405 = vmul.f32 %v1392, %v651
        %v1406 = vmul.f32 %v1393, %v652
        %v1407 = vmul.f32 %v1394, %v653
        %v1408 = vmul.f32 %v1395, %v654
        %v1409 = vmul.f32 %v1396, %v655
        %v1410 = vmul.f32 %v1397, %v656
        %v1411 = vmul.f32 %v1398, %v657
        %v1412 = vmul.f32 %v1399, %v658
        %v1413 = vmul.f32 %v1400, %v659
        %v1414 = vmul.f32 %v1401, %v660
        %v1415 = vmul.f32 %v1402, %v661
        %v1416 = vmul.f32 %v1403, %v662
        %v1417 = vmul.f32 %v1404, %v663
        %v1418 = vadd.f32 %v1379, %v1405
        %v1419 = vadd.f32 %v1380, %v1406
        %v1420 = vadd.f32 %v1381, %v1407
        %v1421 = vadd.f32 %v1382, %v1408
        %v1422 = vadd.f32 %v1383, %v1409
        %v1423 = vadd.f32 %v1384, %v1410
        %v1424 = vadd.f32 %v1385, %v1411
        %v1425 = vadd.f32 %v1386, %v1412
        %v1426 = vadd.f32 %v1387, %v1413
        %v1427 = vadd.f32 %v1388, %v1414
        %v1428 = vadd.f32 %v1389, %v1415
        %v1429 = vadd.f32 %v1390, %v1416
        %v1430 = vadd.f32 %v1391, %v1417
        %v1431 = vmul.f32 %v1237, %v1302
        %v1432 = vmul.f32 %v1239, %v1304
        %v1433 = vmul.f32 %v1241, %v1306
        %v1434 = vmul.f32 %v1243, %v1308
        %v1435 = vmul.f32 %v1245, %v1310
        %v1436 = vmul.f32 %v1247, %v1312
        %v1437 = vmul.f32 %v1249, %v1314
        %v1438 = vmul.f32 %v1251, %v1316
        %v1439 = vmul.f32 %v1253, %v1318
        %v1440 = vmul.f32 %v1255, %v1320
        %v1441 = vmul.f32 %v1257, %v1322
        %v1442 = vmul.f32 %v1259, %v1324
        %v1443 = vmul.f32 %v1261, %v1326
        %v1444 = vmul.f32 %v1431, %v859
        %v1445 = vmul.f32 %v1432, %v860
        %v1446 = vmul.f32 %v1433, %v861
        %v1447 = vmul.f32 %v1434, %v862
        %v1448 = vmul.f32 %v1435, %v863
        %v1449 = vmul.f32 %v1436, %v864
        %v1450 = vmul.f32 %v1437, %v865
        %v1451 = vmul.f32 %v1438, %v866
        %v1452 = vmul.f32 %v1439, %v867
        %v1453 = vmul.f32 %v1440, %v868
        %v1454 = vmul.f32 %v1441, %v869
        %v1455 = vmul.f32 %v1442, %v870
        %v1456 = vmul.f32 %v1443, %v871
        %v1457 = vadd.f32 %v1418, %v1444
        %v1458 = vadd.f32 %v1419, %v1445
        %v1459 = vadd.f32 %v1420, %v1446
        %v1460 = vadd.f32 %v1421, %v1447
        %v1461 = vadd.f32 %v1422, %v1448
        %v1462 = vadd.f32 %v1423, %v1449
        %v1463 = vadd.f32 %v1424, %v1450
        %v1464 = vadd.f32 %v1425, %v1451
        %v1465 = vadd.f32 %v1426, %v1452
        %v1466 = vadd.f32 %v1427, %v1453
        %v1467 = vadd.f32 %v1428, %v1454
        %v1468 = vadd.f32 %v1429, %v1455
        %v1469 = vadd.f32 %v1430, %v1456
        %1470 = vst [vmem:[%s196] sm:$0xff] %v1457
        %1471 = vst [vmem:[%s196 + $0x8] sm:$0xff] %v1458
        %1472 = vst [vmem:[%s196 + $0x10] sm:$0xff] %v1459
        %1473 = vst [vmem:[%s196 + $0x18] sm:$0xff] %v1460
        %1474 = vst [vmem:[%s196 + $0x20] sm:$0xff] %v1461
        %1475 = vst [vmem:[%s196 + $0x28] sm:$0xff] %v1462
        %1476 = vst [vmem:[%s196 + $0x30] sm:$0xff] %v1463
        %1477 = vst [vmem:[%s196 + $0x38] sm:$0xff] %v1464
        %1478 = vst [vmem:[%s196 + $0x40] sm:$0xff] %v1465
        %1479 = vst [vmem:[%s196 + $0x48] sm:$0xff] %v1466
        %1480 = vst [vmem:[%s196 + $0x50] sm:$0xff] %v1467
        %1481 = vst [vmem:[%s196 + $0x58] sm:$0xff] %v1468
        %1482 = vst [vmem:[%s196 + $0x60] sm:$0xff] %v1469
        %s1483 = sand.u32 %s96, 1
        %s1484 = scalar_lea.sflag [#allocation4], %s1483
        %s1485 = sand.u32 %s96, 1
        %s1486 = smul.addr %s1485, 104
        %s1487 = scalar_lea.vmem [#allocation5], %s1486
        // Predicated region
        $region37: #{tpu_custom_call.1} parent=31 // pred_check
          %p1488 = pneg %p106
        $region38: #{tpu_custom_call.1} parent=31 // pred_check_branch
          %1490 = sbr.rel (%p1488) target = $region40
        $region39: #{tpu_custom_call.1} parent=31 // pred_region
          %s1491 = smul.u32 13, %s20
          %s1492 = ssub.s32 25, %s1491
          %p1493 = scmp.lt.s32.totalorder %s1492, 13
          %s1494 = scalar_select %p1493, %s1492, 13
          %s1495 = smul.u32 128, %s1494
          %s1497 = ssub.s32 1664, %s1495
          %1498 = vsyncadd %s1484, %s1497
          %p1499 = scmp.ne.s32.totalorder 0, %s1495
          %s1500 = smul.addr %s1491, 128
          %s1501 = scalar_lea.hbm %s3, %s1500
          %s1502 = smul.u32 8, %s1494
          %s1503 = sshll.u32 %s1487, 4
          %s1504 = int_to_ptr.vmem [resolvable:$true] %s1503
          %s1505 = sshll.u32 %s1502, 4
          %1509 = dma.vmem_to_hbm [thread:$0]  (%p1499), %s1504, %s1505, %s1501, %s1484, 128, 128, 8
        $region40: #{tpu_custom_call.1} parent=31 // pred_fallthru
          _
      $region32: #{tpu_custom_call.1} parent=5 // pred_fallthru
        _
      %p1510 = scmp.le.s32.totalorder 2, %s15
      // Predicated region
      $region41: #{tpu_custom_call.1} parent=5 // pred_check
        %p1511 = pneg %p1510
      $region42: #{tpu_custom_call.1} parent=5 // pred_check_branch
        %1513 = sbr.rel (%p1511) target = $region44
      $region43: #{tpu_custom_call.1} parent=5 // pred_region
        %s1514 = ssub.s32 %s15, 2
        // Predicated region
        $region45: #{tpu_custom_call.1} parent=43 // pred_check
          %p1515 = pneg %p112
        $region46: #{tpu_custom_call.1} parent=43 // pred_check_branch
          %1517 = sbr.rel (%p1515) target = $region48
        $region47: #{tpu_custom_call.1} parent=43 // pred_region
          %s1518 = sand.u32 %s97, 1
          %s1519 = scalar_lea.sflag [#allocation4], %s1518
          %s1520 = sand.u32 %s97, 1
          %s1521 = smul.addr %s1520, 104
          %s1522 = scalar_lea.vmem [#allocation5], %s1521
          %1523 = dma.done %s1519, 1664
        $region48: #{tpu_custom_call.1} parent=43 // pred_fallthru
          _
      $region44: #{tpu_custom_call.1} parent=5 // pred_fallthru
        _
    $region6: #{tpu_custom_call.1} parent=1 // loop_footer
      %s19 = sadd.s32 1, %s15
    $region7: #{tpu_custom_call.1} parent=1 // loop_footer_branch
      %14 = sbr.rel target = $region3
    $region8: #{tpu_custom_call.1} parent=1 // loop_exit
      _
    %1524 = vsyncpa [#allocation3], 1
    %s1525 = scalar_lea.sflag [#allocation3], 1
    %1526 = vsyncpa %s1525, 1
    %1527 = vsyncpa [#allocation4], 1
    %s1528 = scalar_lea.sflag [#allocation4], 1
    %1529 = vsyncpa %s1528, 1

</llo_original>
